<compile_context>
chip_gen: v7x
topology: tpu7x:2x2x1
jax: 0.10.0
libtpu: 0.0.40
codegen_flags: <defaults>
</compile_context>

<pallas_src>
import functools

import jax
import jax.numpy as jnp
from jax import lax
from jax.experimental import pallas as pl
from jax.experimental.pallas import tpu as pltpu


_NEG = -1.0e30  # sentinel "minus infinity" for cosine scores (|score| <= psz^2)


def _round_up(x, m):
    return ((x + m - 1) // m) * m


def _l2_normalize_channels(x, eps=1e-12):
    """F.normalize(x, p=2, dim=1) for NCHW tensors."""
    norm = jnp.sqrt(jnp.sum(x * x, axis=1, keepdims=True))
    return x / jnp.maximum(norm, eps)


def extract_patches(x, patch_size, stride):
    """torch-style patch extraction: NCHW -> (B, nH*nW, C, psz, psz)."""
    B, C, H, W = x.shape
    ph, pw = patch_size
    nH = (H - ph) // stride + 1
    nW = (W - pw) // stride + 1
    i = (jnp.arange(nH) * stride)[:, None] + jnp.arange(ph)[None, :]   # (nH, ph)
    j = (jnp.arange(nW) * stride)[:, None] + jnp.arange(pw)[None, :]   # (nW, pw)
    patches = x[:, :, i[:, None, :, None], j[None, :, None, :]]        # (B,C,nH,nW,ph,pw)
    patches = jnp.transpose(patches, (0, 2, 3, 1, 4, 5))               # (B,nH,nW,C,ph,pw)
    return patches.reshape(B, nH * nW, C, ph, pw)


def _mrf_argmax_kernel(qn_ref, pn_ref, idx_ref, best_s, best_i, *, tq, tp, n_p):
    """One (batch, q-tile, p-tile) step of the streaming patch match.

    qn_ref : (1, tq, Dp) bf16  L2-channel-normalized pred patches (p-invariant)
    pn_ref : (1, tp, Dp) bf16  L2-channel-normalized target patches (streamed over p)
    idx_ref: (1, tq, 128) i32  best-match index, broadcast across lanes
    best_s : (tq, 1) f32 VMEM scratch — running best cosine score
    best_i : (tq, 1) i32 VMEM scratch — running best target index
    """
    p_idx = pl.program_id(2)
    last_p = pl.num_programs(2) - 1

    @pl.when(p_idx == 0)
    def _():
        best_s[...] = jnp.full((tq, 1), _NEG, dtype=jnp.float32)
        best_i[...] = jnp.zeros((tq, 1), dtype=jnp.int32)

    qn = qn_ref[0]       # (tq, Dp) bf16
    pn = pn_ref[0]       # (tp, Dp) bf16

    # Cosine scores S = qn @ pn^T (the Conv2d output in PyTorch), bf16 operands on
    # the MXU with f32 accumulation.
    s = lax.dot_general(qn, pn, (((1,), (1,)), ((), ())),
                        preferred_element_type=jnp.float32)     # (tq, tp)

    # Mask padded target columns so they can never win the argmax.
    col = lax.broadcasted_iota(jnp.int32, s.shape, 1)            # (tq, tp)
    valid_col = (col + p_idx * tp) < n_p
    s = jnp.where(valid_col, s, _NEG)

    # Within-tile argmax with first-index tie-breaking.
    tile_max = jnp.max(s, axis=1, keepdims=True)                 # (tq, 1)
    local_idx = jnp.min(jnp.where(s >= tile_max, col, tp),
                        axis=1, keepdims=True)                   # (tq, 1)
    global_idx = local_idx + p_idx * tp

    # Streaming update; strict '>' keeps the earliest tile on cross-tile ties,
    # preserving first-index argmax semantics.
    improved = tile_max > best_s[...]
    best_i[...] = jnp.where(improved, global_idx, best_i[...])
    best_s[...] = jnp.where(improved, tile_max, best_s[...])

    @pl.when(p_idx == last_p)
    def _():
        # Full-width unmasked store: broadcast the (tq,1) index across 128 lanes.
        idx_ref[0] = jnp.broadcast_to(best_i[...], (tq, 128))


def mrf_loss(pred_style, target_style, weight, patch_size=(3, 3),
             filter_patch_stride=1, compare_stride=1, tq=512, tp=256):
    # `weight` is extracted into patches but never used by the reference forward
    # (topk=1, match=[]); it does not affect the loss.
    del weight

    # Patch extraction (glue, plain JAX). Normalizing the map then extracting
    # patches == extracting then normalizing each pixel along channels.
    target_patches = extract_patches(target_style, patch_size, filter_patch_stride)
    pred_patches = extract_patches(pred_style, patch_size, compare_stride)
    pred_n_patches = extract_patches(_l2_normalize_channels(pred_style),
                                     patch_size, compare_stride)
    targ_n_patches = extract_patches(_l2_normalize_channels(target_style),
                                     patch_size, filter_patch_stride)

    B, nQ, C, ph, pw = pred_patches.shape
    nP = target_patches.shape[1]
    D = C * ph * pw

    # Clamp tiles to the (128-rounded) problem size so small inputs don't over-pad,
    # keeping everything a multiple of 128 for clean MXU / (8,128) tiling.
    tq = min(tq, _round_up(nQ, 128))
    tp = min(tp, _round_up(nP, 128))

    D_pad = _round_up(D, 128)
    nQ_pad = _round_up(nQ, tq)
    nP_pad = _round_up(nP, tp)
    n_qt = nQ_pad // tq
    n_pt = nP_pad // tp

    def prep_bf16(x, n, n_pad):
        x = x.reshape(B, n, D).astype(jnp.float32)
        x = jnp.pad(x, ((0, 0), (0, n_pad - n), (0, D_pad - D)))
        return x.astype(jnp.bfloat16)   # bf16 operands for the MXU, f32 accumulate

    qn = prep_bf16(pred_n_patches, nQ, nQ_pad)     # (B, nQ_pad, D_pad)
    pn = prep_bf16(targ_n_patches, nP, nP_pad)     # (B, nP_pad, D_pad)

    kernel = functools.partial(_mrf_argmax_kernel, tq=tq, tp=tp, n_p=nP)

    idx_out = pl.pallas_call(
        kernel,
        out_shape=jax.ShapeDtypeStruct((B, nQ_pad, 128), jnp.int32),
        grid_spec=pltpu.PrefetchScalarGridSpec(
            num_scalar_prefetch=0,
            grid=(B, n_qt, n_pt),
            in_specs=[
                pl.BlockSpec((1, tq, D_pad), lambda b, q, p: (b, q, 0)),  # qn (p-invariant)
                pl.BlockSpec((1, tp, D_pad), lambda b, q, p: (b, p, 0)),  # pn (streamed)
            ],
            # Output block is invariant along the nP reduction axis; written once on
            # the last nP step.
            out_specs=pl.BlockSpec((1, tq, 128), lambda b, q, p: (b, q, 0)),
            scratch_shapes=[
                pltpu.VMEM((tq, 1), jnp.float32),   # running best cosine score
                pltpu.VMEM((tq, 1), jnp.int32),     # running best target index
            ],
        ),
        compiler_params=pltpu.CompilerParams(
            dimension_semantics=("parallel", "parallel", "arbitrary"),
            vmem_limit_bytes=48 * 1024 * 1024,
        ),
    )(qn, pn)

    # Best-match target index per (batch, query patch). Padded query rows are never
    # read; padded target columns were masked inside the kernel.
    best_idx = idx_out[:, :nQ, 0]                                   # (B, nQ) int32

    # Gather the matched RAW target patches and compute the MSE fully in f32,
    # matching PyTorch's direct difference (no bf16 cancellation).
    pred_flat = pred_patches.reshape(B, nQ, D).astype(jnp.float32)   # (B, nQ, D)
    targ_flat = target_patches.reshape(B, nP, D).astype(jnp.float32) # (B, nP, D)
    gathered = jnp.take_along_axis(targ_flat, best_idx[:, :, None], axis=1)  # (B, nQ, D)

    # MSELoss: mean over every element of the pred patch tensor (B * nQ * C * ph * pw).
    return jnp.mean((pred_flat - gathered) ** 2)


if __name__ == "__main__":
    key = jax.random.PRNGKey(0)
    k1, k2, k3 = jax.random.split(key, 3)
    B, C, H, W = 2, 4, 16, 16
    pred_style = jax.random.normal(k1, (B, C, H, W), dtype=jnp.float32)
    target_style = jax.random.normal(k2, (B, C, H, W), dtype=jnp.float32)
    weight = jax.random.uniform(k3, (B, C, H, W), dtype=jnp.float32)

    loss = mrf_loss(pred_style, target_style, weight)
    loss = jax.block_until_ready(loss)
    assert bool(jnp.isfinite(loss))
    print("KERNEL_OK")
</pallas_src>

<mosaic_0001>
module attributes {stable_mosaic.version = 11 : i64} {
  func.func @_mrf_argmax_kernel(%arg0: i32, %arg1: i32, %arg2: i32, %arg3: memref<1x256x128xbf16, #tpu.memory_space<vmem>>, %arg4: memref<1x256x128xbf16, #tpu.memory_space<vmem>>, %arg5: memref<1x256x128xi32, #tpu.memory_space<vmem>>, %arg6: memref<256x1xf32, #tpu.memory_space<vmem>>, %arg7: memref<256x1xi32, #tpu.memory_space<vmem>>) attributes {dimension_semantics = [#tpu.dimension_semantics<parallel>, #tpu.dimension_semantics<parallel>, #tpu.dimension_semantics<arbitrary>], iteration_bounds = array<i64: 2, 1, 1>, scalar_prefetch = 0 : i64, scratch_operands = 2 : i64, tpu.core_type = #tpu.core_type<tc>, window_params = [{transform_indices = @transform_0, window_bounds = array<i64: 1, 256, 128>}, {transform_indices = @transform_1, window_bounds = array<i64: 1, 256, 128>}, {transform_indices = @transform_2, window_bounds = array<i64: 1, 256, 128>}]} {
    %c0_i32 = arith.constant 0 : i32
    %0 = arith.cmpi eq, %arg2, %c0_i32 : i32
    %1 = arith.extui %0 : i1 to i32
    %c0_i32_0 = arith.constant 0 : i32
    %2 = arith.cmpi ne, %1, %c0_i32_0 : i32
    scf.if %2 {
      %cst_23 = arith.constant -1.000000e+30 : f32
      %38 = vector.broadcast %cst_23 : f32 to vector<256x1xf32>
      %c0_24 = arith.constant 0 : index
      %c0_25 = arith.constant 0 : index
      %39 = vector.load %arg6[%c0_24, %c0_25] : memref<256x1xf32, #tpu.memory_space<vmem>>, vector<256x1xf32>
      tpu.vector_store %arg6[%c0_24, %c0_25], %38 {strides = array<i32>} : memref<256x1xf32, #tpu.memory_space<vmem>>, vector<256x1xf32>,
      %c0_i32_26 = arith.constant 0 : i32
      %40 = vector.broadcast %c0_i32_26 : i32 to vector<256x1xi32>
      %c0_27 = arith.constant 0 : index
      %c0_28 = arith.constant 0 : index
      %41 = vector.load %arg7[%c0_27, %c0_28] : memref<256x1xi32, #tpu.memory_space<vmem>>, vector<256x1xi32>
      tpu.vector_store %arg7[%c0_27, %c0_28], %40 {strides = array<i32>} : memref<256x1xi32, #tpu.memory_space<vmem>>, vector<256x1xi32>,
    } else {
    }
    %c0 = arith.constant 0 : index
    %c0_1 = arith.constant 0 : index
    %c0_2 = arith.constant 0 : index
    %3 = vector.load %arg3[%c0, %c0_1, %c0_2] : memref<1x256x128xbf16, #tpu.memory_space<vmem>>, vector<1x256x128xbf16>
    %4 = vector.shape_cast %3 : vector<1x256x128xbf16> to vector<256x128xbf16>
    %c0_3 = arith.constant 0 : index
    %c0_4 = arith.constant 0 : index
    %c0_5 = arith.constant 0 : index
    %5 = vector.load %arg4[%c0_3, %c0_4, %c0_5] : memref<1x256x128xbf16, #tpu.memory_space<vmem>>, vector<1x256x128xbf16>
    %6 = vector.shape_cast %5 : vector<1x256x128xbf16> to vector<256x128xbf16>
    %cst = arith.constant dense<0.000000e+00> : vector<256x256xf32>
    %7 = tpu.matmul %4, %6, %cst {dimension_numbers = #tpu.dot_dimension_numbers<[1], [1], [0], [0], [0, 0, 1, 0], [], []>} : vector<256x128xbf16>, vector<256x128xbf16>, vector<256x256xf32> -> vector<256x256xf32>
    %8 = tpu.iota {dimensions = array<i32: 1>} : vector<256x256xi32>
    %c256_i32 = arith.constant 256 : i32
    %9 = arith.muli %arg2, %c256_i32 : i32
    %10 = vector.broadcast %9 : i32 to vector<256x256xi32>
    %11 = arith.addi %8, %10 : vector<256x256xi32>
    %c196_i32 = arith.constant 196 : i32
    %12 = vector.broadcast %c196_i32 : i32 to vector<256x256xi32>
    %13 = arith.cmpi slt, %11, %12 : vector<256x256xi32>
    %cst_6 = arith.constant -1.000000e+30 : f32
    %14 = vector.broadcast %cst_6 : f32 to vector<256x256xf32>
    %15 = arith.select %13, %7, %14 : vector<256x256xi1>, vector<256x256xf32>
    %cst_7 = arith.constant dense<0xFF800000> : vector<256xf32>
    %16 = vector.multi_reduction <maximumf>, %15, %cst_7 [1] : vector<256x256xf32> to vector<256xf32>
    %17 = vector.shape_cast %16 : vector<256xf32> to vector<256x1xf32>
    %18 = vector.broadcast %17 : vector<256x1xf32> to vector<256x256xf32>
    %19 = arith.cmpf oge, %15, %18 : vector<256x256xf32>
    %c256_i32_8 = arith.constant 256 : i32
    %20 = vector.broadcast %c256_i32_8 : i32 to vector<256x256xi32>
    %21 = arith.select %19, %8, %20 : vector<256x256xi1>, vector<256x256xi32>
    %cst_9 = arith.constant dense<2147483647> : vector<256xi32>
    %22 = vector.multi_reduction <minsi>, %21, %cst_9 [1] : vector<256x256xi32> to vector<256xi32>
    %23 = vector.shape_cast %22 : vector<256xi32> to vector<256x1xi32>
    %c256_i32_10 = arith.constant 256 : i32
    %24 = arith.muli %arg2, %c256_i32_10 : i32
    %25 = vector.broadcast %24 : i32 to vector<256x1xi32>
    %26 = arith.addi %23, %25 : vector<256x1xi32>
    %c0_11 = arith.constant 0 : index
    %c0_12 = arith.constant 0 : index
    %27 = vector.load %arg6[%c0_11, %c0_12] : memref<256x1xf32, #tpu.memory_space<vmem>>, vector<256x1xf32>
    %28 = arith.cmpf ogt, %17, %27 : vector<256x1xf32>
    %c0_13 = arith.constant 0 : index
    %c0_14 = arith.constant 0 : index
    %29 = vector.load %arg7[%c0_13, %c0_14] : memref<256x1xi32, #tpu.memory_space<vmem>>, vector<256x1xi32>
    %30 = arith.select %28, %26, %29 : vector<256x1xi1>, vector<256x1xi32>
    %c0_15 = arith.constant 0 : index
    %c0_16 = arith.constant 0 : index
    %31 = vector.load %arg7[%c0_15, %c0_16] : memref<256x1xi32, #tpu.memory_space<vmem>>, vector<256x1xi32>
    tpu.vector_store %arg7[%c0_15, %c0_16], %30 {strides = array<i32>} : memref<256x1xi32, #tpu.memory_space<vmem>>, vector<256x1xi32>,
    %c0_17 = arith.constant 0 : index
    %c0_18 = arith.constant 0 : index
    %32 = vector.load %arg6[%c0_17, %c0_18] : memref<256x1xf32, #tpu.memory_space<vmem>>, vector<256x1xf32>
    %33 = arith.select %28, %17, %32 : vector<256x1xi1>, vector<256x1xf32>
    %c0_19 = arith.constant 0 : index
    %c0_20 = arith.constant 0 : index
    %34 = vector.load %arg6[%c0_19, %c0_20] : memref<256x1xf32, #tpu.memory_space<vmem>>, vector<256x1xf32>
    tpu.vector_store %arg6[%c0_19, %c0_20], %33 {strides = array<i32>} : memref<256x1xf32, #tpu.memory_space<vmem>>, vector<256x1xf32>,
    %c0_i32_21 = arith.constant 0 : i32
    %35 = arith.cmpi eq, %arg2, %c0_i32_21 : i32
    %36 = arith.extui %35 : i1 to i32
    %c0_i32_22 = arith.constant 0 : i32
    %37 = arith.cmpi ne, %36, %c0_i32_22 : i32
    scf.if %37 {
      %c0_23 = arith.constant 0 : index
      %c0_24 = arith.constant 0 : index
      %38 = vector.load %arg7[%c0_23, %c0_24] : memref<256x1xi32, #tpu.memory_space<vmem>>, vector<256x1xi32>
      %39 = vector.shape_cast %38 : vector<256x1xi32> to vector<256x1xi32>
      %40 = vector.broadcast %39 : vector<256x1xi32> to vector<256x128xi32>
      %c0_25 = arith.constant 0 : index
      %c0_26 = arith.constant 0 : index
      %c0_27 = arith.constant 0 : index
      %41 = vector.load %arg5[%c0_25, %c0_26, %c0_27] : memref<1x256x128xi32, #tpu.memory_space<vmem>>, vector<1x256x128xi32>
      %42 = vector.shape_cast %41 : vector<1x256x128xi32> to vector<256x128xi32>
      %43 = vector.shape_cast %40 : vector<256x128xi32> to vector<1x256x128xi32>
      tpu.vector_store %arg5[%c0_25, %c0_26, %c0_27], %43 {strides = array<i32>} : memref<1x256x128xi32, #tpu.memory_space<vmem>>, vector<1x256x128xi32>,
    } else {
    }
    return
  }
  func.func @transform_0(%arg0: i32, %arg1: i32, %arg2: i32) -> (i32, i32, i32) {
    %c0_i32 = arith.constant 0 : i32
    %c0_i32_0 = arith.constant 0 : i32
    return %arg0, %arg1, %c0_i32 : i32, i32, i32
  }
  func.func @transform_1(%arg0: i32, %arg1: i32, %arg2: i32) -> (i32, i32, i32) {
    %c0_i32 = arith.constant 0 : i32
    %c0_i32_0 = arith.constant 0 : i32
    return %arg0, %arg2, %c0_i32 : i32, i32, i32
  }
  func.func @transform_2(%arg0: i32, %arg1: i32, %arg2: i32) -> (i32, i32, i32) {
    %c0_i32 = arith.constant 0 : i32
    %c0_i32_0 = arith.constant 0 : i32
    return %arg0, %arg1, %c0_i32 : i32, i32, i32
  }
}

</mosaic_0001>

<llo_original>
// kernel: tpu_custom_call.1
$region0: #{tpu_custom_call.1}
  #allocation0 [shape = 'u32[]', space=smem, size = 0x4, offset = 0x4, fixed_abs, tag = 'smem constant byte address 0x4 - core index']
  #allocation1 [shape = 'u32[144,128]{1,0:T(1,128)}', space=vmem, size = 0x12000, scoped, tag = 'internal scratch']
  #allocation2 [shape = 'f32[256,1]{1,0:T(8,128)}', space=vmem, size = 0x20000, scoped, tag = 'scratch operand']
  #allocation3 [shape = 's32[256,1]{1,0:T(8,128)}', space=vmem, size = 0x20000, scoped, tag = 'scratch operand']
  %s0 = inlined_call_operand.hbm [shape: bf16[2,256,128], index: 0, kind: input, shape index: {}]
  %s1 = inlined_call_operand.hbm [shape: bf16[2,256,128], index: 1, kind: input, shape index: {}]
  %s2 = inlined_call_operand.hbm [shape: s32[2,256,128], index: 2, kind: output, shape index: {}]
  %s3 = sld [smem:[#allocation0]]
  $region57: #{tpu_custom_call.1} parent=0
    _
  %s5 = ssub.s32 1, %s3
  %s6 = scalar_select 0, %s5, %s3
  $region1: #{tpu_custom_call.1} parent=0
    #allocation4 [shape = 'u8[131072]{0}', space=vmem, size = 0x20000, scoped, tag = 'input window, operand 0']
    #allocation5 [shape = 's32[2]{0}', space=sflag, size = 0x8, scoped, tag = 'scoped memory for tpu_custom_call.1']
    #allocation6 [shape = 's32[2]{0}', space=sflag, size = 0x8, scoped, tag = 'scoped memory for tpu_custom_call.1']
    #allocation7 [shape = 'u8[131072]{0}', space=vmem, size = 0x20000, scoped, tag = 'input window, operand 1']
    #allocation8 [shape = 's32[2]{0}', space=sflag, size = 0x8, scoped, tag = 'scoped memory for tpu_custom_call.1']
    #allocation9 [shape = 'u8[262144]{0}', space=vmem, size = 0x40000, scoped, tag = 'output window, operand 0']
    %7 = vsyncpa [#allocation5], 0
    %s8 = scalar_lea.sflag [#allocation5], 1
    %9 = vsyncpa %s8, 0
    %10 = vsyncpa [#allocation8], 0
    %s11 = scalar_lea.sflag [#allocation8], 1
    %12 = vsyncpa %s11, 0
    %13 = vsyncpa [#allocation6], 0
    %s14 = scalar_lea.sflag [#allocation6], 1
    %15 = vsyncpa %s14, 0
    loop: start=0, step=1, limit=4
    $region2: #{tpu_custom_call.1} parent=1 // loop_pre_header
      _
    $region3: #{tpu_custom_call.1} parent=1 // loop_header
      %s17 = sphi 0, %s21
      %p18 = scmp.ge.s32.totalorder %s17, 4
      %s24 = sphi 0, %s43
      %s25 = sphi 0, %s39
      %s26 = sphi 0, %s35
      %s27 = sphi 0, %s24
      %s28 = sphi 0, %s25
      %s29 = sphi 0, %s26
      %s30 = sphi 0, %s27
      %s31 = sphi 0, %s28
      %s32 = sphi 0, %s29
      %s48 = sphi 0, %s50
      %s51 = sphi 0, %s48
      %s52 = sphi 0, %s51
      %s68 = sphi 0, %s52
      %s76 = sphi 0, %s78
      %s79 = sphi 0, %s76
      %s80 = sphi 0, %s79
      %s96 = sphi 0, %s80
      %s104 = sphi 0, %s106
      %s107 = sphi 0, %s104
      %s108 = sphi 0, %s107
      %s124 = sphi 0, %s108
    $region4: #{tpu_custom_call.1} parent=1 // loop_header_branch
      %20 = sbr.rel (%p18) target = $region8
    $region5: #{tpu_custom_call.1} parent=1 // loop_body
      %s22 = ssub.s32 %s17, 1
      %s23 = ssub.s32 %s17, 2
      %s33 = sadd.s32 1, %s26
      %p34 = scmp.ge.s32.totalorder %s33, 1
      %s35 = scalar_select %p34, 0, %s33
      %s36 = sadd.s32 1, %s25
      %s37 = scalar_select %p34, %s36, %s25
      %p38 = scmp.ge.s32.totalorder %s37, 1
      %s39 = scalar_select %p38, 0, %s37
      %s40 = sadd.s32 1, %s24
      %s41 = scalar_select %p38, %s40, %s24
      %p42 = scmp.ge.s32.totalorder %s41, 2
      %s43 = scalar_select %p42, 0, %s41
      %s44 = ssub.s32 %s24, %s43
      %s45 = ssub.s32 %s25, %s39
      %s46 = sor.u32 %s44, %s45
      %p47 = scmp.eq.s32.totalorder %s46, 0
      %s49 = sadd.s32 %s48, 1
      %s50 = scalar_select %p47, %s48, %s49
      %p53 = pneg %p47
      %p54 = scmp.eq.s32.totalorder %s17, 1
      %p55 = por %p53, %p54
      %p56 = scmp.ne.s32.totalorder %s48, %s51
      %p57 = scmp.eq.s32.totalorder %s17, 0
      %p58 = por %p56, %p57
      %p59 = scmp.ne.s32.totalorder %s48, %s51
      %p60 = scmp.eq.s32.totalorder %s22, 1
      %p61 = por %p59, %p60
      %p62 = scmp.ne.s32.totalorder %s51, %s52
      %p63 = scmp.eq.s32.totalorder %s22, 0
      %p64 = por %p62, %p63
      %p65 = scmp.ne.s32.totalorder %s51, %s52
      %p66 = scmp.eq.s32.totalorder %s23, 1
      %p67 = por %p65, %p66
      %p69 = scmp.ne.s32.totalorder %s52, %s68
      %p70 = scmp.eq.s32.totalorder %s23, 0
      %p71 = por %p69, %p70
      %s72 = ssub.s32 %s24, %s43
      %s73 = ssub.s32 %s26, %s35
      %s74 = sor.u32 %s72, %s73
      %p75 = scmp.eq.s32.totalorder %s74, 0
      %s77 = sadd.s32 %s76, 1
      %s78 = scalar_select %p75, %s76, %s77
      %p81 = pneg %p75
      %p82 = scmp.eq.s32.totalorder %s17, 1
      %p83 = por %p81, %p82
      %p84 = scmp.ne.s32.totalorder %s76, %s79
      %p85 = scmp.eq.s32.totalorder %s17, 0
      %p86 = por %p84, %p85
      %p87 = scmp.ne.s32.totalorder %s76, %s79
      %p88 = scmp.eq.s32.totalorder %s22, 1
      %p89 = por %p87, %p88
      %p90 = scmp.ne.s32.totalorder %s79, %s80
      %p91 = scmp.eq.s32.totalorder %s22, 0
      %p92 = por %p90, %p91
      %p93 = scmp.ne.s32.totalorder %s79, %s80
      %p94 = scmp.eq.s32.totalorder %s23, 1
      %p95 = por %p93, %p94
      %p97 = scmp.ne.s32.totalorder %s80, %s96
      %p98 = scmp.eq.s32.totalorder %s23, 0
      %p99 = por %p97, %p98
      %s100 = ssub.s32 %s24, %s43
      %s101 = ssub.s32 %s25, %s39
      %s102 = sor.u32 %s100, %s101
      %p103 = scmp.eq.s32.totalorder %s102, 0
      %s105 = sadd.s32 %s104, 1
      %s106 = scalar_select %p103, %s104, %s105
      %p109 = pneg %p103
      %p110 = scmp.eq.s32.totalorder %s17, 1
      %p111 = por %p109, %p110
      %p112 = scmp.ne.s32.totalorder %s104, %s107
      %p113 = scmp.eq.s32.totalorder %s17, 0
      %p114 = por %p112, %p113
      %p115 = scmp.ne.s32.totalorder %s104, %s107
      %p116 = scmp.eq.s32.totalorder %s22, 1
      %p117 = por %p115, %p116
      %p118 = scmp.ne.s32.totalorder %s107, %s108
      %p119 = scmp.eq.s32.totalorder %s22, 0
      %p120 = por %p118, %p119
      %p121 = scmp.ne.s32.totalorder %s107, %s108
      %p122 = scmp.eq.s32.totalorder %s23, 1
      %p123 = por %p121, %p122
      %p125 = scmp.ne.s32.totalorder %s108, %s124
      %p126 = scmp.eq.s32.totalorder %s23, 0
      %p127 = por %p125, %p126
      %p128 = scmp.le.s32.totalorder 1, %s17
      %p129 = scmp.lt.s32.totalorder %s17, 3
      %p130 = pnand %p128, %p129
      %p131 = pneg %p130
      // Predicated region
      $region9: #{tpu_custom_call.1} parent=5 // pred_check
        _
      $region10: #{tpu_custom_call.1} parent=5 // pred_check_branch
        %133 = sbr.rel (%p130) target = $region12
      $region11: #{tpu_custom_call.1} parent=5 // pred_region
        %s134 = ssub.s32 %s17, 1
      $region12: #{tpu_custom_call.1} parent=5 // pred_fallthru
        _
      %p135 = scmp.lt.s32.totalorder %s17, 2
      // Predicated region
      $region13: #{tpu_custom_call.1} parent=5 // pred_check
        %p136 = pneg %p135
      $region14: #{tpu_custom_call.1} parent=5 // pred_check_branch
        %138 = sbr.rel (%p136) target = $region16
      $region15: #{tpu_custom_call.1} parent=5 // pred_region
        // Predicated region
        $region17: #{tpu_custom_call.1} parent=15 // pred_check
          %p139 = pneg %p58
        $region18: #{tpu_custom_call.1} parent=15 // pred_check_branch
          %141 = sbr.rel (%p139) target = $region20
        $region19: #{tpu_custom_call.1} parent=15 // pred_region
          %s142 = sand.u32 %s48, 1
          %s143 = scalar_lea.sflag [#allocation5], %s142
          %s144 = sand.u32 %s48, 1
          %s145 = smul.addr %s144, 128
          %s146 = scalar_lea.vmem [#allocation4], %s145
          %s147 = smul.u32 32, %s25
          %s149 = ssub.s32 2048, 2048
          %150 = vsyncadd %s143, %s149
          %s151 = smul.addr %s24, 32
          %s152 = sadd.s32 %s147, %s151
          %s153 = smul.addr %s152, 64
          %s154 = scalar_lea.hbm %s0, %s153
          %s155 = sshll.u32 %s146, 4
          %s156 = int_to_ptr.vmem [resolvable:$true] %s155
          %161 = dma.hbm_to_vmem [thread:$0]  %s154, 2048, %s156, %s143, 64, 64, 4
        $region20: #{tpu_custom_call.1} parent=15 // pred_fallthru
          _
        // Predicated region
        $region21: #{tpu_custom_call.1} parent=15 // pred_check
          %p162 = pneg %p86
        $region22: #{tpu_custom_call.1} parent=15 // pred_check_branch
          %164 = sbr.rel (%p162) target = $region24
        $region23: #{tpu_custom_call.1} parent=15 // pred_region
          %s165 = sand.u32 %s76, 1
          %s166 = scalar_lea.sflag [#allocation8], %s165
          %s167 = sand.u32 %s76, 1
          %s168 = smul.addr %s167, 128
          %s169 = scalar_lea.vmem [#allocation7], %s168
          %s170 = smul.u32 32, %s26
          %s172 = ssub.s32 2048, 2048
          %173 = vsyncadd %s166, %s172
          %s174 = smul.addr %s24, 32
          %s175 = sadd.s32 %s170, %s174
          %s176 = smul.addr %s175, 64
          %s177 = scalar_lea.hbm %s1, %s176
          %s178 = sshll.u32 %s169, 4
          %s179 = int_to_ptr.vmem [resolvable:$true] %s178
          %184 = dma.hbm_to_vmem [thread:$0]  %s177, 2048, %s179, %s166, 64, 64, 4
        $region24: #{tpu_custom_call.1} parent=15 // pred_fallthru
          _
      $region16: #{tpu_custom_call.1} parent=5 // pred_fallthru
        _
      %p185 = scmp.le.s32.totalorder 1, %s17
      %p186 = scmp.lt.s32.totalorder %s17, 3
      %p187 = pnand %p185, %p186
      %p188 = pneg %p187
      // Predicated region
      $region25: #{tpu_custom_call.1} parent=5 // pred_check
        _
      $region26: #{tpu_custom_call.1} parent=5 // pred_check_branch
        %190 = sbr.rel (%p187) target = $region28
      $region27: #{tpu_custom_call.1} parent=5 // pred_region
        %s191 = ssub.s32 %s17, 1
        %s192 = sand.u32 %s51, 1
        %s193 = scalar_lea.sflag [#allocation5], %s192
        %s194 = sand.u32 %s51, 1
        %s195 = smul.addr %s194, 128
        %s196 = scalar_lea.vmem [#allocation4], %s195
        // Predicated region
        $region29: #{tpu_custom_call.1} parent=27 // pred_check
          %p197 = pneg %p64
        $region30: #{tpu_custom_call.1} parent=27 // pred_check_branch
          %199 = sbr.rel (%p197) target = $region32
        $region31: #{tpu_custom_call.1} parent=27 // pred_region
          %200 = dma.done %s193, 2048
        $region32: #{tpu_custom_call.1} parent=27 // pred_fallthru
          _
        %s201 = sand.u32 %s79, 1
        %s202 = scalar_lea.sflag [#allocation8], %s201
        %s203 = sand.u32 %s79, 1
        %s204 = smul.addr %s203, 128
        %s205 = scalar_lea.vmem [#allocation7], %s204
        // Predicated region
        $region33: #{tpu_custom_call.1} parent=27 // pred_check
          %p206 = pneg %p92
        $region34: #{tpu_custom_call.1} parent=27 // pred_check_branch
          %208 = sbr.rel (%p206) target = $region36
        $region35: #{tpu_custom_call.1} parent=27 // pred_region
          %209 = dma.done %s202, 2048
        $region36: #{tpu_custom_call.1} parent=27 // pred_fallthru
          _
        %s210 = sand.u32 %s51, 1
        %s211 = scalar_lea.sflag [#allocation5], %s210
        %s212 = sand.u32 %s51, 1
        %s213 = smul.addr %s212, 128
        %s214 = scalar_lea.vmem [#allocation4], %s213
        %p215 = pneg %p64
        %p216 = pneg %p61
        %s217 = sand.u32 %s79, 1
        %s218 = scalar_lea.sflag [#allocation8], %s217
        %s219 = sand.u32 %s79, 1
        %s220 = smul.addr %s219, 128
        %s221 = scalar_lea.vmem [#allocation7], %s220
        %p222 = pneg %p92
        %p223 = pneg %p89
        %p224 = pneg %p120
        %p225 = pneg %p117
        %s226 = sand.u32 %s107, 1
        %s227 = scalar_lea.sflag [#allocation6], %s226
        %s228 = sand.u32 %s107, 1
        %s229 = smul.addr %s228, 256
        %s230 = scalar_lea.vmem [#allocation9], %s229
        %s231 = smul.u32 32, %s28
        %s232 = smul.u32 32, %s29
        %s233 = smul.u32 32, %s28
        %p235 = scmp.eq.s32.totalorder %s29, 0
        // Predicated region
        $region37: #{tpu_custom_call.1} parent=27 // pred_check
          %p236 = pneg %p235
        $region38: #{tpu_custom_call.1} parent=27 // pred_check_branch
          %238 = sbr.rel (%p236) target = $region40
        $region39: #{tpu_custom_call.1} parent=27 // pred_region
          %vm239 = vcmask 7168
          %240 = vst.msk [vmem:[#allocation2] sm:$0xff] %vm239, -1e+30
          %241 = vst.msk [vmem:[#allocation2 + $0x8] sm:$0xff] %vm239, -1e+30
          %242 = vst.msk [vmem:[#allocation2 + $0x10] sm:$0xff] %vm239, -1e+30
          %243 = vst.msk [vmem:[#allocation2 + $0x18] sm:$0xff] %vm239, -1e+30
          %244 = vst.msk [vmem:[#allocation2 + $0x20] sm:$0xff] %vm239, -1e+30
          %245 = vst.msk [vmem:[#allocation2 + $0x28] sm:$0xff] %vm239, -1e+30
          %246 = vst.msk [vmem:[#allocation2 + $0x30] sm:$0xff] %vm239, -1e+30
          %247 = vst.msk [vmem:[#allocation2 + $0x38] sm:$0xff] %vm239, -1e+30
          %248 = vst.msk [vmem:[#allocation2 + $0x40] sm:$0xff] %vm239, -1e+30
          %249 = vst.msk [vmem:[#allocation2 + $0x48] sm:$0xff] %vm239, -1e+30
          %250 = vst.msk [vmem:[#allocation2 + $0x50] sm:$0xff] %vm239, -1e+30
          %251 = vst.msk [vmem:[#allocation2 + $0x58] sm:$0xff] %vm239, -1e+30
          %252 = vst.msk [vmem:[#allocation2 + $0x60] sm:$0xff] %vm239, -1e+30
          %253 = vst.msk [vmem:[#allocation2 + $0x68] sm:$0xff] %vm239, -1e+30
          %254 = vst.msk [vmem:[#allocation2 + $0x70] sm:$0xff] %vm239, -1e+30
          %255 = vst.msk [vmem:[#allocation2 + $0x78] sm:$0xff] %vm239, -1e+30
          %256 = vst.msk [vmem:[#allocation2 + $0x80] sm:$0xff] %vm239, -1e+30
          %257 = vst.msk [vmem:[#allocation2 + $0x88] sm:$0xff] %vm239, -1e+30
          %258 = vst.msk [vmem:[#allocation2 + $0x90] sm:$0xff] %vm239, -1e+30
          %259 = vst.msk [vmem:[#allocation2 + $0x98] sm:$0xff] %vm239, -1e+30
          %260 = vst.msk [vmem:[#allocation2 + $0xa0] sm:$0xff] %vm239, -1e+30
          %261 = vst.msk [vmem:[#allocation2 + $0xa8] sm:$0xff] %vm239, -1e+30
          %262 = vst.msk [vmem:[#allocation2 + $0xb0] sm:$0xff] %vm239, -1e+30
          %263 = vst.msk [vmem:[#allocation2 + $0xb8] sm:$0xff] %vm239, -1e+30
          %264 = vst.msk [vmem:[#allocation2 + $0xc0] sm:$0xff] %vm239, -1e+30
          %265 = vst.msk [vmem:[#allocation2 + $0xc8] sm:$0xff] %vm239, -1e+30
          %266 = vst.msk [vmem:[#allocation2 + $0xd0] sm:$0xff] %vm239, -1e+30
          %267 = vst.msk [vmem:[#allocation2 + $0xd8] sm:$0xff] %vm239, -1e+30
          %268 = vst.msk [vmem:[#allocation2 + $0xe0] sm:$0xff] %vm239, -1e+30
          %269 = vst.msk [vmem:[#allocation2 + $0xe8] sm:$0xff] %vm239, -1e+30
          %270 = vst.msk [vmem:[#allocation2 + $0xf0] sm:$0xff] %vm239, -1e+30
          %271 = vst.msk [vmem:[#allocation2 + $0xf8] sm:$0xff] %vm239, -1e+30
          %272 = vst.msk [vmem:[#allocation3] sm:$0xff] %vm239, 0
          %273 = vst.msk [vmem:[#allocation3 + $0x8] sm:$0xff] %vm239, 0
          %274 = vst.msk [vmem:[#allocation3 + $0x10] sm:$0xff] %vm239, 0
          %275 = vst.msk [vmem:[#allocation3 + $0x18] sm:$0xff] %vm239, 0
          %276 = vst.msk [vmem:[#allocation3 + $0x20] sm:$0xff] %vm239, 0
          %277 = vst.msk [vmem:[#allocation3 + $0x28] sm:$0xff] %vm239, 0
          %278 = vst.msk [vmem:[#allocation3 + $0x30] sm:$0xff] %vm239, 0
          %279 = vst.msk [vmem:[#allocation3 + $0x38] sm:$0xff] %vm239, 0
          %280 = vst.msk [vmem:[#allocation3 + $0x40] sm:$0xff] %vm239, 0
          %281 = vst.msk [vmem:[#allocation3 + $0x48] sm:$0xff] %vm239, 0
          %282 = vst.msk [vmem:[#allocation3 + $0x50] sm:$0xff] %vm239, 0
          %283 = vst.msk [vmem:[#allocation3 + $0x58] sm:$0xff] %vm239, 0
          %284 = vst.msk [vmem:[#allocation3 + $0x60] sm:$0xff] %vm239, 0
          %285 = vst.msk [vmem:[#allocation3 + $0x68] sm:$0xff] %vm239, 0
          %286 = vst.msk [vmem:[#allocation3 + $0x70] sm:$0xff] %vm239, 0
          %287 = vst.msk [vmem:[#allocation3 + $0x78] sm:$0xff] %vm239, 0
          %288 = vst.msk [vmem:[#allocation3 + $0x80] sm:$0xff] %vm239, 0
          %289 = vst.msk [vmem:[#allocation3 + $0x88] sm:$0xff] %vm239, 0
          %290 = vst.msk [vmem:[#allocation3 + $0x90] sm:$0xff] %vm239, 0
          %291 = vst.msk [vmem:[#allocation3 + $0x98] sm:$0xff] %vm239, 0
          %292 = vst.msk [vmem:[#allocation3 + $0xa0] sm:$0xff] %vm239, 0
          %293 = vst.msk [vmem:[#allocation3 + $0xa8] sm:$0xff] %vm239, 0
          %294 = vst.msk [vmem:[#allocation3 + $0xb0] sm:$0xff] %vm239, 0
          %295 = vst.msk [vmem:[#allocation3 + $0xb8] sm:$0xff] %vm239, 0
          %296 = vst.msk [vmem:[#allocation3 + $0xc0] sm:$0xff] %vm239, 0
          %297 = vst.msk [vmem:[#allocation3 + $0xc8] sm:$0xff] %vm239, 0
          %298 = vst.msk [vmem:[#allocation3 + $0xd0] sm:$0xff] %vm239, 0
          %299 = vst.msk [vmem:[#allocation3 + $0xd8] sm:$0xff] %vm239, 0
          %300 = vst.msk [vmem:[#allocation3 + $0xe0] sm:$0xff] %vm239, 0
          %301 = vst.msk [vmem:[#allocation3 + $0xe8] sm:$0xff] %vm239, 0
          %302 = vst.msk [vmem:[#allocation3 + $0xf0] sm:$0xff] %vm239, 0
          %303 = vst.msk [vmem:[#allocation3 + $0xf8] sm:$0xff] %vm239, 0
        $region40: #{tpu_custom_call.1} parent=27 // pred_fallthru
          _
        %v304 = vld [vmem:[%s196] sm:$0xf]
        %v305 = vld [vmem:[%s196 + $0x4] sm:$0xf]
        %v306 = vld [vmem:[%s196 + $0x8] sm:$0xf]
        %v307 = vld [vmem:[%s196 + $0xc] sm:$0xf]
        %v308 = vld [vmem:[%s196 + $0x10] sm:$0xf]
        %v309 = vld [vmem:[%s196 + $0x14] sm:$0xf]
        %v310 = vld [vmem:[%s196 + $0x18] sm:$0xf]
        %v311 = vld [vmem:[%s196 + $0x1c] sm:$0xf]
        %v312 = vld [vmem:[%s196 + $0x20] sm:$0xf]
        %v313 = vld [vmem:[%s196 + $0x24] sm:$0xf]
        %v314 = vld [vmem:[%s196 + $0x28] sm:$0xf]
        %v315 = vld [vmem:[%s196 + $0x2c] sm:$0xf]
        %v316 = vld [vmem:[%s196 + $0x30] sm:$0xf]
        %v317 = vld [vmem:[%s196 + $0x34] sm:$0xf]
        %v318 = vld [vmem:[%s196 + $0x38] sm:$0xf]
        %v319 = vld [vmem:[%s196 + $0x3c] sm:$0xf]
        %v320 = vld [vmem:[%s196 + $0x40] sm:$0xf]
        %v321 = vld [vmem:[%s196 + $0x44] sm:$0xf]
        %v322 = vld [vmem:[%s196 + $0x48] sm:$0xf]
        %v323 = vld [vmem:[%s196 + $0x4c] sm:$0xf]
        %v324 = vld [vmem:[%s196 + $0x50] sm:$0xf]
        %v325 = vld [vmem:[%s196 + $0x54] sm:$0xf]
        %v326 = vld [vmem:[%s196 + $0x58] sm:$0xf]
        %v327 = vld [vmem:[%s196 + $0x5c] sm:$0xf]
        %v328 = vld [vmem:[%s196 + $0x60] sm:$0xf]
        %v329 = vld [vmem:[%s196 + $0x64] sm:$0xf]
        %v330 = vld [vmem:[%s196 + $0x68] sm:$0xf]
        %v331 = vld [vmem:[%s196 + $0x6c] sm:$0xf]
        %v332 = vld [vmem:[%s196 + $0x70] sm:$0xf]
        %v333 = vld [vmem:[%s196 + $0x74] sm:$0xf]
        %v334 = vld [vmem:[%s196 + $0x78] sm:$0xf]
        %v335 = vld [vmem:[%s196 + $0x7c] sm:$0xf]
        %v336 = vld [vmem:[%s205] sm:$0xf]
        %v337 = vld [vmem:[%s205 + $0x4] sm:$0xf]
        %v338 = vld [vmem:[%s205 + $0x8] sm:$0xf]
        %v339 = vld [vmem:[%s205 + $0xc] sm:$0xf]
        %v340 = vld [vmem:[%s205 + $0x10] sm:$0xf]
        %v341 = vld [vmem:[%s205 + $0x14] sm:$0xf]
        %v342 = vld [vmem:[%s205 + $0x18] sm:$0xf]
        %v343 = vld [vmem:[%s205 + $0x1c] sm:$0xf]
        %v344 = vld [vmem:[%s205 + $0x20] sm:$0xf]
        %v345 = vld [vmem:[%s205 + $0x24] sm:$0xf]
        %v346 = vld [vmem:[%s205 + $0x28] sm:$0xf]
        %v347 = vld [vmem:[%s205 + $0x2c] sm:$0xf]
        %v348 = vld [vmem:[%s205 + $0x30] sm:$0xf]
        %v349 = vld [vmem:[%s205 + $0x34] sm:$0xf]
        %v350 = vld [vmem:[%s205 + $0x38] sm:$0xf]
        %v351 = vld [vmem:[%s205 + $0x3c] sm:$0xf]
        %v352 = vld [vmem:[%s205 + $0x40] sm:$0xf]
        %v353 = vld [vmem:[%s205 + $0x44] sm:$0xf]
        %v354 = vld [vmem:[%s205 + $0x48] sm:$0xf]
        %v355 = vld [vmem:[%s205 + $0x4c] sm:$0xf]
        %v356 = vld [vmem:[%s205 + $0x50] sm:$0xf]
        %v357 = vld [vmem:[%s205 + $0x54] sm:$0xf]
        %v358 = vld [vmem:[%s205 + $0x58] sm:$0xf]
        %v359 = vld [vmem:[%s205 + $0x5c] sm:$0xf]
        %v360 = vld [vmem:[%s205 + $0x60] sm:$0xf]
        %v361 = vld [vmem:[%s205 + $0x64] sm:$0xf]
        %v362 = vld [vmem:[%s205 + $0x68] sm:$0xf]
        %v363 = vld [vmem:[%s205 + $0x6c] sm:$0xf]
        %v364 = vld [vmem:[%s205 + $0x70] sm:$0xf]
        %v365 = vld [vmem:[%s205 + $0x74] sm:$0xf]
        %v366 = vld [vmem:[%s205 + $0x78] sm:$0xf]
        %v367 = vld [vmem:[%s205 + $0x7c] sm:$0xf]
        %v400 = vunpack.c.l.b16 %v304
        %v401 = vunpack.c.l.b16 %v305
        %v402 = vunpack.c.l.b16 %v306
        %v403 = vunpack.c.l.b16 %v307
        %v404 = vunpack.c.l.b16 %v308
        %v405 = vunpack.c.l.b16 %v309
        %v406 = vunpack.c.l.b16 %v310
        %v407 = vunpack.c.l.b16 %v311
        %v408 = vunpack.c.l.b16 %v312
        %v409 = vunpack.c.l.b16 %v313
        %v410 = vunpack.c.l.b16 %v314
        %v411 = vunpack.c.l.b16 %v315
        %v412 = vunpack.c.l.b16 %v316
        %v413 = vunpack.c.l.b16 %v317
        %v414 = vunpack.c.l.b16 %v318
        %v415 = vunpack.c.l.b16 %v319
        %v416 = vunpack.c.l.b16 %v320
        %v417 = vunpack.c.l.b16 %v321
        %v418 = vunpack.c.l.b16 %v322
        %v419 = vunpack.c.l.b16 %v323
        %v420 = vunpack.c.l.b16 %v324
        %v421 = vunpack.c.l.b16 %v325
        %v422 = vunpack.c.l.b16 %v326
        %v423 = vunpack.c.l.b16 %v327
        %v424 = vunpack.c.l.b16 %v328
        %v425 = vunpack.c.l.b16 %v329
        %v426 = vunpack.c.l.b16 %v330
        %v427 = vunpack.c.l.b16 %v331
        %v428 = vunpack.c.l.b16 %v332
        %v429 = vunpack.c.l.b16 %v333
        %v430 = vunpack.c.l.b16 %v334
        %v431 = vunpack.c.l.b16 %v335
        %v432 = vpack.c.b16 %v401, %v400
        %v433 = vpack.c.b16 %v403, %v402
        %v434 = vpack.c.b16 %v405, %v404
        %v435 = vpack.c.b16 %v407, %v406
        %v436 = vpack.c.b16 %v409, %v408
        %v437 = vpack.c.b16 %v411, %v410
        %v438 = vpack.c.b16 %v413, %v412
        %v439 = vpack.c.b16 %v415, %v414
        %v440 = vpack.c.b16 %v417, %v416
        %v441 = vpack.c.b16 %v419, %v418
        %v442 = vpack.c.b16 %v421, %v420
        %v443 = vpack.c.b16 %v423, %v422
        %v444 = vpack.c.b16 %v425, %v424
        %v445 = vpack.c.b16 %v427, %v426
        %v446 = vpack.c.b16 %v429, %v428
        %v447 = vpack.c.b16 %v431, %v430
        %v496 = vunpack.c.l.b16 %v336
        %v497 = vunpack.c.l.b16 %v337
        %v498 = vunpack.c.l.b16 %v338
        %v499 = vunpack.c.l.b16 %v339
        %v500 = vunpack.c.l.b16 %v340
        %v501 = vunpack.c.l.b16 %v341
        %v502 = vunpack.c.l.b16 %v342
        %v503 = vunpack.c.l.b16 %v343
        %v504 = vunpack.c.l.b16 %v344
        %v505 = vunpack.c.l.b16 %v345
        %v506 = vunpack.c.l.b16 %v346
        %v507 = vunpack.c.l.b16 %v347
        %v508 = vunpack.c.l.b16 %v348
        %v509 = vunpack.c.l.b16 %v349
        %v510 = vunpack.c.l.b16 %v350
        %v511 = vunpack.c.l.b16 %v351
        %v512 = vunpack.c.l.b16 %v352
        %v513 = vunpack.c.l.b16 %v353
        %v514 = vunpack.c.l.b16 %v354
        %v515 = vunpack.c.l.b16 %v355
        %v516 = vunpack.c.l.b16 %v356
        %v517 = vunpack.c.l.b16 %v357
        %v518 = vunpack.c.l.b16 %v358
        %v519 = vunpack.c.l.b16 %v359
        %v520 = vunpack.c.l.b16 %v360
        %v521 = vunpack.c.l.b16 %v361
        %v522 = vunpack.c.l.b16 %v362
        %v523 = vunpack.c.l.b16 %v363
        %v524 = vunpack.c.l.b16 %v364
        %v525 = vunpack.c.l.b16 %v365
        %v526 = vunpack.c.l.b16 %v366
        %v527 = vunpack.c.l.b16 %v367
        %v528 = vpack.c.b16 %v497, %v496
        %v529 = vpack.c.b16 %v499, %v498
        %v530 = vpack.c.b16 %v501, %v500
        %v531 = vpack.c.b16 %v503, %v502
        %v532 = vpack.c.b16 %v505, %v504
        %v533 = vpack.c.b16 %v507, %v506
        %v534 = vpack.c.b16 %v509, %v508
        %v535 = vpack.c.b16 %v511, %v510
        %v536 = vpack.c.b16 %v513, %v512
        %v537 = vpack.c.b16 %v515, %v514
        %v538 = vpack.c.b16 %v517, %v516
        %v539 = vpack.c.b16 %v519, %v518
        %v540 = vpack.c.b16 %v521, %v520
        %v541 = vpack.c.b16 %v523, %v522
        %v542 = vpack.c.b16 %v525, %v524
        %v543 = vpack.c.b16 %v527, %v526
        %560 = vmatprep.subr.bf16.mxu0 0
        %561 = vmatpush1.bf16.xpose.msra.mxu0 %v528
        %562 = vmatprep.subr.bf16.mxu0 0
        %563 = vmatpush1.bf16.xpose.msra.mxu0 %v529
        %564 = vmatprep.subr.bf16.mxu0 0
        %565 = vmatpush1.bf16.xpose.msra.mxu0 %v530
        %566 = vmatprep.subr.bf16.mxu0 0
        %567 = vmatpush1.bf16.xpose.msra.mxu0 %v531
        %568 = vmatprep.subr.bf16.mxu0 0
        %569 = vmatpush1.bf16.xpose.msra.mxu0 %v532
        %570 = vmatprep.subr.bf16.mxu0 0
        %571 = vmatpush1.bf16.xpose.msra.mxu0 %v533
        %572 = vmatprep.subr.bf16.mxu0 0
        %573 = vmatpush1.bf16.xpose.msra.mxu0 %v534
        %574 = vmatprep.subr.bf16.mxu0 0
        %575 = vmatpush1.bf16.xpose.msra.mxu0 %v535
        %576 = vmatprep.subr.bf16.mxu0 0
        %577 = vmatpush1.bf16.xpose.msra.mxu0 %v536
        %578 = vmatprep.subr.bf16.mxu0 0
        %579 = vmatpush1.bf16.xpose.msra.mxu0 %v537
        %580 = vmatprep.subr.bf16.mxu0 0
        %581 = vmatpush1.bf16.xpose.msra.mxu0 %v538
        %582 = vmatprep.subr.bf16.mxu0 0
        %583 = vmatpush1.bf16.xpose.msra.mxu0 %v539
        %584 = vmatprep.subr.bf16.mxu0 0
        %585 = vmatpush1.bf16.xpose.msra.mxu0 %v540
        %586 = vmatprep.subr.bf16.mxu0 0
        %587 = vmatpush1.bf16.xpose.msra.mxu0 %v541
        %588 = vmatprep.subr.bf16.mxu0 0
        %589 = vmatpush1.bf16.xpose.msra.mxu0 %v542
        %590 = vmatprep.subr.bf16.mxu0 0
        %591 = vmatpush1.bf16.xpose.msra.mxu0 %v543
        %592 = vmatprep.mubr.bf16.mxu0 0
        %593 = vmatmul.mubr.bf16.gmra.mrb[0].mxu0 %v432
        %v594 = vpop.f32.mrb[0].mxu0
        %v595 = vadd.f32 0.0, %v594
        %v596 = vpop.f32.mrb[0].mxu0
        %v597 = vadd.f32 0.0, %v596
        %v598 = vpop.f32.mrb[0].mxu0
        %v599 = vadd.f32 0.0, %v598
        %v600 = vpop.f32.mrb[0].mxu0
        %v601 = vadd.f32 0.0, %v600
        %602 = vmatprep.mubr.bf16.mxu0 0
        %603 = vmatmul.mubr.bf16.gmra.mrb[0].mxu0 %v433
        %v604 = vpop.f32.mrb[0].mxu0
        %v605 = vadd.f32 0.0, %v604
        %v606 = vpop.f32.mrb[0].mxu0
        %v607 = vadd.f32 0.0, %v606
        %v608 = vpop.f32.mrb[0].mxu0
        %v609 = vadd.f32 0.0, %v608
        %v610 = vpop.f32.mrb[0].mxu0
        %v611 = vadd.f32 0.0, %v610
        %612 = vmatprep.mubr.bf16.mxu0 0
        %613 = vmatmul.mubr.bf16.gmra.mrb[0].mxu0 %v434
        %v614 = vpop.f32.mrb[0].mxu0
        %v615 = vadd.f32 0.0, %v614
        %v616 = vpop.f32.mrb[0].mxu0
        %v617 = vadd.f32 0.0, %v616
        %v618 = vpop.f32.mrb[0].mxu0
        %v619 = vadd.f32 0.0, %v618
        %v620 = vpop.f32.mrb[0].mxu0
        %v621 = vadd.f32 0.0, %v620
        %622 = vmatprep.mubr.bf16.mxu0 0
        %623 = vmatmul.mubr.bf16.gmra.mrb[0].mxu0 %v435
        %v624 = vpop.f32.mrb[0].mxu0
        %v625 = vadd.f32 0.0, %v624
        %v626 = vpop.f32.mrb[0].mxu0
        %v627 = vadd.f32 0.0, %v626
        %v628 = vpop.f32.mrb[0].mxu0
        %v629 = vadd.f32 0.0, %v628
        %v630 = vpop.f32.mrb[0].mxu0
        %v631 = vadd.f32 0.0, %v630
        %632 = vmatprep.mubr.bf16.mxu0 0
        %633 = vmatmul.mubr.bf16.gmra.mrb[0].mxu0 %v436
        %v634 = vpop.f32.mrb[0].mxu0
        %v635 = vadd.f32 0.0, %v634
        %v636 = vpop.f32.mrb[0].mxu0
        %v637 = vadd.f32 0.0, %v636
        %v638 = vpop.f32.mrb[0].mxu0
        %v639 = vadd.f32 0.0, %v638
        %v640 = vpop.f32.mrb[0].mxu0
        %v641 = vadd.f32 0.0, %v640
        %642 = vmatprep.mubr.bf16.mxu0 0
        %643 = vmatmul.mubr.bf16.gmra.mrb[0].mxu0 %v437
        %v644 = vpop.f32.mrb[0].mxu0
        %v645 = vadd.f32 0.0, %v644
        %v646 = vpop.f32.mrb[0].mxu0
        %v647 = vadd.f32 0.0, %v646
        %v648 = vpop.f32.mrb[0].mxu0
        %v649 = vadd.f32 0.0, %v648
        %v650 = vpop.f32.mrb[0].mxu0
        %v651 = vadd.f32 0.0, %v650
        %652 = vmatprep.mubr.bf16.mxu0 0
        %653 = vmatmul.mubr.bf16.gmra.mrb[0].mxu0 %v438
        %v654 = vpop.f32.mrb[0].mxu0
        %v655 = vadd.f32 0.0, %v654
        %v656 = vpop.f32.mrb[0].mxu0
        %v657 = vadd.f32 0.0, %v656
        %v658 = vpop.f32.mrb[0].mxu0
        %v659 = vadd.f32 0.0, %v658
        %v660 = vpop.f32.mrb[0].mxu0
        %v661 = vadd.f32 0.0, %v660
        %662 = vmatprep.mubr.bf16.mxu0 0
        %663 = vmatmul.mubr.bf16.gmra.mrb[0].mxu0 %v439
        %v664 = vpop.f32.mrb[0].mxu0
        %v665 = vadd.f32 0.0, %v664
        %v666 = vpop.f32.mrb[0].mxu0
        %v667 = vadd.f32 0.0, %v666
        %v668 = vpop.f32.mrb[0].mxu0
        %v669 = vadd.f32 0.0, %v668
        %v670 = vpop.f32.mrb[0].mxu0
        %v671 = vadd.f32 0.0, %v670
        %672 = vmatprep.mubr.bf16.mxu0 0
        %673 = vmatmul.mubr.bf16.gmra.mrb[0].mxu0 %v440
        %v674 = vpop.f32.mrb[0].mxu0
        %v675 = vadd.f32 0.0, %v674
        %v676 = vpop.f32.mrb[0].mxu0
        %v677 = vadd.f32 0.0, %v676
        %v678 = vpop.f32.mrb[0].mxu0
        %v679 = vadd.f32 0.0, %v678
        %v680 = vpop.f32.mrb[0].mxu0
        %v681 = vadd.f32 0.0, %v680
        %682 = vmatprep.mubr.bf16.mxu0 0
        %683 = vmatmul.mubr.bf16.gmra.mrb[0].mxu0 %v441
        %v684 = vpop.f32.mrb[0].mxu0
        %v685 = vadd.f32 0.0, %v684
        %v686 = vpop.f32.mrb[0].mxu0
        %v687 = vadd.f32 0.0, %v686
        %v688 = vpop.f32.mrb[0].mxu0
        %v689 = vadd.f32 0.0, %v688
        %v690 = vpop.f32.mrb[0].mxu0
        %v691 = vadd.f32 0.0, %v690
        %692 = vmatprep.mubr.bf16.mxu0 0
        %693 = vmatmul.mubr.bf16.gmra.mrb[0].mxu0 %v442
        %v694 = vpop.f32.mrb[0].mxu0
        %v695 = vadd.f32 0.0, %v694
        %v696 = vpop.f32.mrb[0].mxu0
        %v697 = vadd.f32 0.0, %v696
        %v698 = vpop.f32.mrb[0].mxu0
        %v699 = vadd.f32 0.0, %v698
        %v700 = vpop.f32.mrb[0].mxu0
        %v701 = vadd.f32 0.0, %v700
        %702 = vmatprep.mubr.bf16.mxu0 0
        %703 = vmatmul.mubr.bf16.gmra.mrb[0].mxu0 %v443
        %v704 = vpop.f32.mrb[0].mxu0
        %v705 = vadd.f32 0.0, %v704
        %v706 = vpop.f32.mrb[0].mxu0
        %v707 = vadd.f32 0.0, %v706
        %v708 = vpop.f32.mrb[0].mxu0
        %v709 = vadd.f32 0.0, %v708
        %v710 = vpop.f32.mrb[0].mxu0
        %v711 = vadd.f32 0.0, %v710
        %712 = vmatprep.mubr.bf16.mxu0 0
        %713 = vmatmul.mubr.bf16.gmra.mrb[0].mxu0 %v444
        %v714 = vpop.f32.mrb[0].mxu0
        %v715 = vadd.f32 0.0, %v714
        %v716 = vpop.f32.mrb[0].mxu0
        %v717 = vadd.f32 0.0, %v716
        %v718 = vpop.f32.mrb[0].mxu0
        %v719 = vadd.f32 0.0, %v718
        %v720 = vpop.f32.mrb[0].mxu0
        %v721 = vadd.f32 0.0, %v720
        %722 = vmatprep.mubr.bf16.mxu0 0
        %723 = vmatmul.mubr.bf16.gmra.mrb[0].mxu0 %v445
        %v724 = vpop.f32.mrb[0].mxu0
        %v725 = vadd.f32 0.0, %v724
        %v726 = vpop.f32.mrb[0].mxu0
        %v727 = vadd.f32 0.0, %v726
        %v728 = vpop.f32.mrb[0].mxu0
        %v729 = vadd.f32 0.0, %v728
        %v730 = vpop.f32.mrb[0].mxu0
        %v731 = vadd.f32 0.0, %v730
        %732 = vmatprep.mubr.bf16.mxu0 0
        %733 = vmatmul.mubr.bf16.gmra.mrb[0].mxu0 %v446
        %v734 = vpop.f32.mrb[0].mxu0
        %v735 = vadd.f32 0.0, %v734
        %v736 = vpop.f32.mrb[0].mxu0
        %v737 = vadd.f32 0.0, %v736
        %v738 = vpop.f32.mrb[0].mxu0
        %v739 = vadd.f32 0.0, %v738
        %v740 = vpop.f32.mrb[0].mxu0
        %v741 = vadd.f32 0.0, %v740
        %742 = vmatprep.mubr.bf16.mxu0 0
        %743 = vmatmul.mubr.bf16.gmra.mrb[0].mxu0 %v447
        %v744 = vpop.f32.mrb[0].mxu0
        %v745 = vadd.f32 0.0, %v744
        %v746 = vpop.f32.mrb[0].mxu0
        %v747 = vadd.f32 0.0, %v746
        %v748 = vpop.f32.mrb[0].mxu0
        %v749 = vadd.f32 0.0, %v748
        %v750 = vpop.f32.mrb[0].mxu0
        %v751 = vadd.f32 0.0, %v750
        %752 = vdwg.mxu0
        %v753 = vlaneseq
        %v754 = vand.u32 %v753, 127
        %v755 = vadd.s32 %v754, 128
        %s756 = smul.u32 %s29, 256
        %v757 = vstv %s756
        %v758 = vadd.s32 %v754, %v757
        %v759 = vadd.s32 %v755, %v757
        %vm760 = vcmp.lt.s32.totalorder %v758, 196
        %vm761 = vcmp.lt.s32.totalorder %v759, 196
        %v762 = vsel %vm760, %v595, -1e+30
        %v763 = vsel %vm761, %v597, -1e+30
        %v764 = vsel %vm760, %v599, -1e+30
        %v765 = vsel %vm761, %v601, -1e+30
        %v766 = vsel %vm760, %v605, -1e+30
        %v767 = vsel %vm761, %v607, -1e+30
        %v768 = vsel %vm760, %v609, -1e+30
        %v769 = vsel %vm761, %v611, -1e+30
        %v770 = vsel %vm760, %v615, -1e+30
        %v771 = vsel %vm761, %v617, -1e+30
        %v772 = vsel %vm760, %v619, -1e+30
        %v773 = vsel %vm761, %v621, -1e+30
        %v774 = vsel %vm760, %v625, -1e+30
        %v775 = vsel %vm761, %v627, -1e+30
        %v776 = vsel %vm760, %v629, -1e+30
        %v777 = vsel %vm761, %v631, -1e+30
        %v778 = vsel %vm760, %v635, -1e+30
        %v779 = vsel %vm761, %v637, -1e+30
        %v780 = vsel %vm760, %v639, -1e+30
        %v781 = vsel %vm761, %v641, -1e+30
        %v782 = vsel %vm760, %v645, -1e+30
        %v783 = vsel %vm761, %v647, -1e+30
        %v784 = vsel %vm760, %v649, -1e+30
        %v785 = vsel %vm761, %v651, -1e+30
        %v786 = vsel %vm760, %v655, -1e+30
        %v787 = vsel %vm761, %v657, -1e+30
        %v788 = vsel %vm760, %v659, -1e+30
        %v789 = vsel %vm761, %v661, -1e+30
        %v790 = vsel %vm760, %v665, -1e+30
        %v791 = vsel %vm761, %v667, -1e+30
        %v792 = vsel %vm760, %v669, -1e+30
        %v793 = vsel %vm761, %v671, -1e+30
        %v794 = vsel %vm760, %v675, -1e+30
        %v795 = vsel %vm761, %v677, -1e+30
        %v796 = vsel %vm760, %v679, -1e+30
        %v797 = vsel %vm761, %v681, -1e+30
        %v798 = vsel %vm760, %v685, -1e+30
        %v799 = vsel %vm761, %v687, -1e+30
        %v800 = vsel %vm760, %v689, -1e+30
        %v801 = vsel %vm761, %v691, -1e+30
        %v802 = vsel %vm760, %v695, -1e+30
        %v803 = vsel %vm761, %v697, -1e+30
        %v804 = vsel %vm760, %v699, -1e+30
        %v805 = vsel %vm761, %v701, -1e+30
        %v806 = vsel %vm760, %v705, -1e+30
        %v807 = vsel %vm761, %v707, -1e+30
        %v808 = vsel %vm760, %v709, -1e+30
        %v809 = vsel %vm761, %v711, -1e+30
        %v810 = vsel %vm760, %v715, -1e+30
        %v811 = vsel %vm761, %v717, -1e+30
        %v812 = vsel %vm760, %v719, -1e+30
        %v813 = vsel %vm761, %v721, -1e+30
        %v814 = vsel %vm760, %v725, -1e+30
        %v815 = vsel %vm761, %v727, -1e+30
        %v816 = vsel %vm760, %v729, -1e+30
        %v817 = vsel %vm761, %v731, -1e+30
        %v818 = vsel %vm760, %v735, -1e+30
        %v819 = vsel %vm761, %v737, -1e+30
        %v820 = vsel %vm760, %v739, -1e+30
        %v821 = vsel %vm761, %v741, -1e+30
        %v822 = vsel %vm760, %v745, -1e+30
        %v823 = vsel %vm761, %v747, -1e+30
        %v824 = vsel %vm760, %v749, -1e+30
        %v825 = vsel %vm761, %v751, -1e+30
        %v826 = vmax.f32 %v762, %v763
        %827 = vmax.xlane.f32.xlu0 %v826
        %v828 = vpop.xlane.xlu0 %827
        %v829 = vmax.f32 %v764, %v765
        %830 = vmax.xlane.f32.xlu0 %v829
        %v831 = vpop.xlane.xlu0 %830
        %v832 = vmax.f32 %v766, %v767
        %833 = vmax.xlane.f32.xlu0 %v832
        %v834 = vpop.xlane.xlu0 %833
        %v835 = vmax.f32 %v768, %v769
        %836 = vmax.xlane.f32.xlu0 %v835
        %v837 = vpop.xlane.xlu0 %836
        %v838 = vmax.f32 %v770, %v771
        %839 = vmax.xlane.f32.xlu0 %v838
        %v840 = vpop.xlane.xlu0 %839
        %v841 = vmax.f32 %v772, %v773
        %842 = vmax.xlane.f32.xlu0 %v841
        %v843 = vpop.xlane.xlu0 %842
        %v844 = vmax.f32 %v774, %v775
        %845 = vmax.xlane.f32.xlu0 %v844
        %v846 = vpop.xlane.xlu0 %845
        %v847 = vmax.f32 %v776, %v777
        %848 = vmax.xlane.f32.xlu0 %v847
        %v849 = vpop.xlane.xlu0 %848
        %v850 = vmax.f32 %v778, %v779
        %851 = vmax.xlane.f32.xlu0 %v850
        %v852 = vpop.xlane.xlu0 %851
        %v853 = vmax.f32 %v780, %v781
        %854 = vmax.xlane.f32.xlu0 %v853
        %v855 = vpop.xlane.xlu0 %854
        %v856 = vmax.f32 %v782, %v783
        %857 = vmax.xlane.f32.xlu0 %v856
        %v858 = vpop.xlane.xlu0 %857
        %v859 = vmax.f32 %v784, %v785
        %860 = vmax.xlane.f32.xlu0 %v859
        %v861 = vpop.xlane.xlu0 %860
        %v862 = vmax.f32 %v786, %v787
        %863 = vmax.xlane.f32.xlu0 %v862
        %v864 = vpop.xlane.xlu0 %863
        %v865 = vmax.f32 %v788, %v789
        %866 = vmax.xlane.f32.xlu0 %v865
        %v867 = vpop.xlane.xlu0 %866
        %v868 = vmax.f32 %v790, %v791
        %869 = vmax.xlane.f32.xlu0 %v868
        %v870 = vpop.xlane.xlu0 %869
        %v871 = vmax.f32 %v792, %v793
        %872 = vmax.xlane.f32.xlu0 %v871
        %v873 = vpop.xlane.xlu0 %872
        %v874 = vmax.f32 %v794, %v795
        %875 = vmax.xlane.f32.xlu0 %v874
        %v876 = vpop.xlane.xlu0 %875
        %v877 = vmax.f32 %v796, %v797
        %878 = vmax.xlane.f32.xlu0 %v877
        %v879 = vpop.xlane.xlu0 %878
        %v880 = vmax.f32 %v798, %v799
        %881 = vmax.xlane.f32.xlu0 %v880
        %v882 = vpop.xlane.xlu0 %881
        %v883 = vmax.f32 %v800, %v801
        %884 = vmax.xlane.f32.xlu0 %v883
        %v885 = vpop.xlane.xlu0 %884
        %v886 = vmax.f32 %v802, %v803
        %887 = vmax.xlane.f32.xlu0 %v886
        %v888 = vpop.xlane.xlu0 %887
        %v889 = vmax.f32 %v804, %v805
        %890 = vmax.xlane.f32.xlu0 %v889
        %v891 = vpop.xlane.xlu0 %890
        %v892 = vmax.f32 %v806, %v807
        %893 = vmax.xlane.f32.xlu0 %v892
        %v894 = vpop.xlane.xlu0 %893
        %v895 = vmax.f32 %v808, %v809
        %896 = vmax.xlane.f32.xlu0 %v895
        %v897 = vpop.xlane.xlu0 %896
        %v898 = vmax.f32 %v810, %v811
        %899 = vmax.xlane.f32.xlu0 %v898
        %v900 = vpop.xlane.xlu0 %899
        %v901 = vmax.f32 %v812, %v813
        %902 = vmax.xlane.f32.xlu0 %v901
        %v903 = vpop.xlane.xlu0 %902
        %v904 = vmax.f32 %v814, %v815
        %905 = vmax.xlane.f32.xlu0 %v904
        %v906 = vpop.xlane.xlu0 %905
        %v907 = vmax.f32 %v816, %v817
        %908 = vmax.xlane.f32.xlu0 %v907
        %v909 = vpop.xlane.xlu0 %908
        %v910 = vmax.f32 %v818, %v819
        %911 = vmax.xlane.f32.xlu0 %v910
        %v912 = vpop.xlane.xlu0 %911
        %v913 = vmax.f32 %v820, %v821
        %914 = vmax.xlane.f32.xlu0 %v913
        %v915 = vpop.xlane.xlu0 %914
        %v916 = vmax.f32 %v822, %v823
        %917 = vmax.xlane.f32.xlu0 %v916
        %v918 = vpop.xlane.xlu0 %917
        %v919 = vmax.f32 %v824, %v825
        %920 = vmax.xlane.f32.xlu0 %v919
        %v921 = vpop.xlane.xlu0 %920
        %vm922 = vcmp.ge.f32.partialorder %v762, %v828
        %vm923 = vcmp.ge.f32.partialorder %v763, %v828
        %vm924 = vcmp.ge.f32.partialorder %v764, %v831
        %vm925 = vcmp.ge.f32.partialorder %v765, %v831
        %vm926 = vcmp.ge.f32.partialorder %v766, %v834
        %vm927 = vcmp.ge.f32.partialorder %v767, %v834
        %vm928 = vcmp.ge.f32.partialorder %v768, %v837
        %vm929 = vcmp.ge.f32.partialorder %v769, %v837
        %vm930 = vcmp.ge.f32.partialorder %v770, %v840
        %vm931 = vcmp.ge.f32.partialorder %v771, %v840
        %vm932 = vcmp.ge.f32.partialorder %v772, %v843
        %vm933 = vcmp.ge.f32.partialorder %v773, %v843
        %vm934 = vcmp.ge.f32.partialorder %v774, %v846
        %vm935 = vcmp.ge.f32.partialorder %v775, %v846
        %vm936 = vcmp.ge.f32.partialorder %v776, %v849
        %vm937 = vcmp.ge.f32.partialorder %v777, %v849
        %vm938 = vcmp.ge.f32.partialorder %v778, %v852
        %vm939 = vcmp.ge.f32.partialorder %v779, %v852
        %vm940 = vcmp.ge.f32.partialorder %v780, %v855
        %vm941 = vcmp.ge.f32.partialorder %v781, %v855
        %vm942 = vcmp.ge.f32.partialorder %v782, %v858
        %vm943 = vcmp.ge.f32.partialorder %v783, %v858
        %vm944 = vcmp.ge.f32.partialorder %v784, %v861
        %vm945 = vcmp.ge.f32.partialorder %v785, %v861
        %vm946 = vcmp.ge.f32.partialorder %v786, %v864
        %vm947 = vcmp.ge.f32.partialorder %v787, %v864
        %vm948 = vcmp.ge.f32.partialorder %v788, %v867
        %vm949 = vcmp.ge.f32.partialorder %v789, %v867
        %vm950 = vcmp.ge.f32.partialorder %v790, %v870
        %vm951 = vcmp.ge.f32.partialorder %v791, %v870
        %vm952 = vcmp.ge.f32.partialorder %v792, %v873
        %vm953 = vcmp.ge.f32.partialorder %v793, %v873
        %vm954 = vcmp.ge.f32.partialorder %v794, %v876
        %vm955 = vcmp.ge.f32.partialorder %v795, %v876
        %vm956 = vcmp.ge.f32.partialorder %v796, %v879
        %vm957 = vcmp.ge.f32.partialorder %v797, %v879
        %vm958 = vcmp.ge.f32.partialorder %v798, %v882
        %vm959 = vcmp.ge.f32.partialorder %v799, %v882
        %vm960 = vcmp.ge.f32.partialorder %v800, %v885
        %vm961 = vcmp.ge.f32.partialorder %v801, %v885
        %vm962 = vcmp.ge.f32.partialorder %v802, %v888
        %vm963 = vcmp.ge.f32.partialorder %v803, %v888
        %vm964 = vcmp.ge.f32.partialorder %v804, %v891
        %vm965 = vcmp.ge.f32.partialorder %v805, %v891
        %vm966 = vcmp.ge.f32.partialorder %v806, %v894
        %vm967 = vcmp.ge.f32.partialorder %v807, %v894
        %vm968 = vcmp.ge.f32.partialorder %v808, %v897
        %vm969 = vcmp.ge.f32.partialorder %v809, %v897
        %vm970 = vcmp.ge.f32.partialorder %v810, %v900
        %vm971 = vcmp.ge.f32.partialorder %v811, %v900
        %vm972 = vcmp.ge.f32.partialorder %v812, %v903
        %vm973 = vcmp.ge.f32.partialorder %v813, %v903
        %vm974 = vcmp.ge.f32.partialorder %v814, %v906
        %vm975 = vcmp.ge.f32.partialorder %v815, %v906
        %vm976 = vcmp.ge.f32.partialorder %v816, %v909
        %vm977 = vcmp.ge.f32.partialorder %v817, %v909
        %vm978 = vcmp.ge.f32.partialorder %v818, %v912
        %vm979 = vcmp.ge.f32.partialorder %v819, %v912
        %vm980 = vcmp.ge.f32.partialorder %v820, %v915
        %vm981 = vcmp.ge.f32.partialorder %v821, %v915
        %vm982 = vcmp.ge.f32.partialorder %v822, %v918
        %vm983 = vcmp.ge.f32.partialorder %v823, %v918
        %vm984 = vcmp.ge.f32.partialorder %v824, %v921
        %vm985 = vcmp.ge.f32.partialorder %v825, %v921
        %v986 = vsel %vm922, %v754, 256
        %v987 = vsel %vm923, %v755, 256
        %v988 = vsel %vm924, %v754, 256
        %v989 = vsel %vm925, %v755, 256
        %v990 = vsel %vm926, %v754, 256
        %v991 = vsel %vm927, %v755, 256
        %v992 = vsel %vm928, %v754, 256
        %v993 = vsel %vm929, %v755, 256
        %v994 = vsel %vm930, %v754, 256
        %v995 = vsel %vm931, %v755, 256
        %v996 = vsel %vm932, %v754, 256
        %v997 = vsel %vm933, %v755, 256
        %v998 = vsel %vm934, %v754, 256
        %v999 = vsel %vm935, %v755, 256
        %v1000 = vsel %vm936, %v754, 256
        %v1001 = vsel %vm937, %v755, 256
        %v1002 = vsel %vm938, %v754, 256
        %v1003 = vsel %vm939, %v755, 256
        %v1004 = vsel %vm940, %v754, 256
        %v1005 = vsel %vm941, %v755, 256
        %v1006 = vsel %vm942, %v754, 256
        %v1007 = vsel %vm943, %v755, 256
        %v1008 = vsel %vm944, %v754, 256
        %v1009 = vsel %vm945, %v755, 256
        %v1010 = vsel %vm946, %v754, 256
        %v1011 = vsel %vm947, %v755, 256
        %v1012 = vsel %vm948, %v754, 256
        %v1013 = vsel %vm949, %v755, 256
        %v1014 = vsel %vm950, %v754, 256
        %v1015 = vsel %vm951, %v755, 256
        %v1016 = vsel %vm952, %v754, 256
        %v1017 = vsel %vm953, %v755, 256
        %v1018 = vsel %vm954, %v754, 256
        %v1019 = vsel %vm955, %v755, 256
        %v1020 = vsel %vm956, %v754, 256
        %v1021 = vsel %vm957, %v755, 256
        %v1022 = vsel %vm958, %v754, 256
        %v1023 = vsel %vm959, %v755, 256
        %v1024 = vsel %vm960, %v754, 256
        %v1025 = vsel %vm961, %v755, 256
        %v1026 = vsel %vm962, %v754, 256
        %v1027 = vsel %vm963, %v755, 256
        %v1028 = vsel %vm964, %v754, 256
        %v1029 = vsel %vm965, %v755, 256
        %v1030 = vsel %vm966, %v754, 256
        %v1031 = vsel %vm967, %v755, 256
        %v1032 = vsel %vm968, %v754, 256
        %v1033 = vsel %vm969, %v755, 256
        %v1034 = vsel %vm970, %v754, 256
        %v1035 = vsel %vm971, %v755, 256
        %v1036 = vsel %vm972, %v754, 256
        %v1037 = vsel %vm973, %v755, 256
        %v1038 = vsel %vm974, %v754, 256
        %v1039 = vsel %vm975, %v755, 256
        %v1040 = vsel %vm976, %v754, 256
        %v1041 = vsel %vm977, %v755, 256
        %v1042 = vsel %vm978, %v754, 256
        %v1043 = vsel %vm979, %v755, 256
        %v1044 = vsel %vm980, %v754, 256
        %v1045 = vsel %vm981, %v755, 256
        %v1046 = vsel %vm982, %v754, 256
        %v1047 = vsel %vm983, %v755, 256
        %v1048 = vsel %vm984, %v754, 256
        %v1049 = vsel %vm985, %v755, 256
        %vm1050 = vcmp.lt.s32.totalorder %v986, %v987
        %v1051 = vsel %vm1050, %v986, %v987
        %v1052 = vand.u32 %v1051, 65535
        %v1053 = vshra.s32 %v1051, 16
        %v1054 = vcvt.s32.f32 %v1052
        %v1055 = vcvt.s32.f32 %v1053
        %1056 = vmin.xlane.f32.xlu0 %v1055
        %v1057 = vpop.xlane.xlu0 %1056
        %vm1058 = vcmp.eq.f32.partialorder %v1055, %v1057
        %v1059 = vsel %vm1058, %v1054, inf
        %1060 = vmin.xlane.f32.xlu0 %v1059
        %v1061 = vpop.xlane.xlu0 %1060
        %v1062 = vcvt.f32.s32 %v1061
        %v1063 = vcvt.f32.s32 %v1057
        %v1064 = vshll.u32 %v1063, 16
        %v1065 = vadd.s32 %v1064, %v1062
        %vm1066 = vcmp.lt.s32.totalorder %v988, %v989
        %v1067 = vsel %vm1066, %v988, %v989
        %v1068 = vand.u32 %v1067, 65535
        %v1069 = vshra.s32 %v1067, 16
        %v1070 = vcvt.s32.f32 %v1068
        %v1071 = vcvt.s32.f32 %v1069
        %1072 = vmin.xlane.f32.xlu0 %v1071
        %v1073 = vpop.xlane.xlu0 %1072
        %vm1074 = vcmp.eq.f32.partialorder %v1071, %v1073
        %v1075 = vsel %vm1074, %v1070, inf
        %1076 = vmin.xlane.f32.xlu0 %v1075
        %v1077 = vpop.xlane.xlu0 %1076
        %v1078 = vcvt.f32.s32 %v1077
        %v1079 = vcvt.f32.s32 %v1073
        %v1080 = vshll.u32 %v1079, 16
        %v1081 = vadd.s32 %v1080, %v1078
        %vm1082 = vcmp.lt.s32.totalorder %v990, %v991
        %v1083 = vsel %vm1082, %v990, %v991
        %v1084 = vand.u32 %v1083, 65535
        %v1085 = vshra.s32 %v1083, 16
        %v1086 = vcvt.s32.f32 %v1084
        %v1087 = vcvt.s32.f32 %v1085
        %1088 = vmin.xlane.f32.xlu0 %v1087
        %v1089 = vpop.xlane.xlu0 %1088
        %vm1090 = vcmp.eq.f32.partialorder %v1087, %v1089
        %v1091 = vsel %vm1090, %v1086, inf
        %1092 = vmin.xlane.f32.xlu0 %v1091
        %v1093 = vpop.xlane.xlu0 %1092
        %v1094 = vcvt.f32.s32 %v1093
        %v1095 = vcvt.f32.s32 %v1089
        %v1096 = vshll.u32 %v1095, 16
        %v1097 = vadd.s32 %v1096, %v1094
        %vm1098 = vcmp.lt.s32.totalorder %v992, %v993
        %v1099 = vsel %vm1098, %v992, %v993
        %v1100 = vand.u32 %v1099, 65535
        %v1101 = vshra.s32 %v1099, 16
        %v1102 = vcvt.s32.f32 %v1100
        %v1103 = vcvt.s32.f32 %v1101
        %1104 = vmin.xlane.f32.xlu0 %v1103
        %v1105 = vpop.xlane.xlu0 %1104
        %vm1106 = vcmp.eq.f32.partialorder %v1103, %v1105
        %v1107 = vsel %vm1106, %v1102, inf
        %1108 = vmin.xlane.f32.xlu0 %v1107
        %v1109 = vpop.xlane.xlu0 %1108
        %v1110 = vcvt.f32.s32 %v1109
        %v1111 = vcvt.f32.s32 %v1105
        %v1112 = vshll.u32 %v1111, 16
        %v1113 = vadd.s32 %v1112, %v1110
        %vm1114 = vcmp.lt.s32.totalorder %v994, %v995
        %v1115 = vsel %vm1114, %v994, %v995
        %v1116 = vand.u32 %v1115, 65535
        %v1117 = vshra.s32 %v1115, 16
        %v1118 = vcvt.s32.f32 %v1116
        %v1119 = vcvt.s32.f32 %v1117
        %1120 = vmin.xlane.f32.xlu0 %v1119
        %v1121 = vpop.xlane.xlu0 %1120
        %vm1122 = vcmp.eq.f32.partialorder %v1119, %v1121
        %v1123 = vsel %vm1122, %v1118, inf
        %1124 = vmin.xlane.f32.xlu0 %v1123
        %v1125 = vpop.xlane.xlu0 %1124
        %v1126 = vcvt.f32.s32 %v1125
        %v1127 = vcvt.f32.s32 %v1121
        %v1128 = vshll.u32 %v1127, 16
        %v1129 = vadd.s32 %v1128, %v1126
        %vm1130 = vcmp.lt.s32.totalorder %v996, %v997
        %v1131 = vsel %vm1130, %v996, %v997
        %v1132 = vand.u32 %v1131, 65535
        %v1133 = vshra.s32 %v1131, 16
        %v1134 = vcvt.s32.f32 %v1132
        %v1135 = vcvt.s32.f32 %v1133
        %1136 = vmin.xlane.f32.xlu0 %v1135
        %v1137 = vpop.xlane.xlu0 %1136
        %vm1138 = vcmp.eq.f32.partialorder %v1135, %v1137
        %v1139 = vsel %vm1138, %v1134, inf
        %1140 = vmin.xlane.f32.xlu0 %v1139
        %v1141 = vpop.xlane.xlu0 %1140
        %v1142 = vcvt.f32.s32 %v1141
        %v1143 = vcvt.f32.s32 %v1137
        %v1144 = vshll.u32 %v1143, 16
        %v1145 = vadd.s32 %v1144, %v1142
        %vm1146 = vcmp.lt.s32.totalorder %v998, %v999
        %v1147 = vsel %vm1146, %v998, %v999
        %v1148 = vand.u32 %v1147, 65535
        %v1149 = vshra.s32 %v1147, 16
        %v1150 = vcvt.s32.f32 %v1148
        %v1151 = vcvt.s32.f32 %v1149
        %1152 = vmin.xlane.f32.xlu0 %v1151
        %v1153 = vpop.xlane.xlu0 %1152
        %vm1154 = vcmp.eq.f32.partialorder %v1151, %v1153
        %v1155 = vsel %vm1154, %v1150, inf
        %1156 = vmin.xlane.f32.xlu0 %v1155
        %v1157 = vpop.xlane.xlu0 %1156
        %v1158 = vcvt.f32.s32 %v1157
        %v1159 = vcvt.f32.s32 %v1153
        %v1160 = vshll.u32 %v1159, 16
        %v1161 = vadd.s32 %v1160, %v1158
        %vm1162 = vcmp.lt.s32.totalorder %v1000, %v1001
        %v1163 = vsel %vm1162, %v1000, %v1001
        %v1164 = vand.u32 %v1163, 65535
        %v1165 = vshra.s32 %v1163, 16
        %v1166 = vcvt.s32.f32 %v1164
        %v1167 = vcvt.s32.f32 %v1165
        %1168 = vmin.xlane.f32.xlu0 %v1167
        %v1169 = vpop.xlane.xlu0 %1168
        %vm1170 = vcmp.eq.f32.partialorder %v1167, %v1169
        %v1171 = vsel %vm1170, %v1166, inf
        %1172 = vmin.xlane.f32.xlu0 %v1171
        %v1173 = vpop.xlane.xlu0 %1172
        %v1174 = vcvt.f32.s32 %v1173
        %v1175 = vcvt.f32.s32 %v1169
        %v1176 = vshll.u32 %v1175, 16
        %v1177 = vadd.s32 %v1176, %v1174
        %vm1178 = vcmp.lt.s32.totalorder %v1002, %v1003
        %v1179 = vsel %vm1178, %v1002, %v1003
        %v1180 = vand.u32 %v1179, 65535
        %v1181 = vshra.s32 %v1179, 16
        %v1182 = vcvt.s32.f32 %v1180
        %v1183 = vcvt.s32.f32 %v1181
        %1184 = vmin.xlane.f32.xlu0 %v1183
        %v1185 = vpop.xlane.xlu0 %1184
        %vm1186 = vcmp.eq.f32.partialorder %v1183, %v1185
        %v1187 = vsel %vm1186, %v1182, inf
        %1188 = vmin.xlane.f32.xlu0 %v1187
        %v1189 = vpop.xlane.xlu0 %1188
        %v1190 = vcvt.f32.s32 %v1189
        %v1191 = vcvt.f32.s32 %v1185
        %v1192 = vshll.u32 %v1191, 16
        %v1193 = vadd.s32 %v1192, %v1190
        %vm1194 = vcmp.lt.s32.totalorder %v1004, %v1005
        %v1195 = vsel %vm1194, %v1004, %v1005
        %v1196 = vand.u32 %v1195, 65535
        %v1197 = vshra.s32 %v1195, 16
        %v1198 = vcvt.s32.f32 %v1196
        %v1199 = vcvt.s32.f32 %v1197
        %1200 = vmin.xlane.f32.xlu0 %v1199
        %v1201 = vpop.xlane.xlu0 %1200
        %vm1202 = vcmp.eq.f32.partialorder %v1199, %v1201
        %v1203 = vsel %vm1202, %v1198, inf
        %1204 = vmin.xlane.f32.xlu0 %v1203
        %v1205 = vpop.xlane.xlu0 %1204
        %v1206 = vcvt.f32.s32 %v1205
        %v1207 = vcvt.f32.s32 %v1201
        %v1208 = vshll.u32 %v1207, 16
        %v1209 = vadd.s32 %v1208, %v1206
        %vm1210 = vcmp.lt.s32.totalorder %v1006, %v1007
        %v1211 = vsel %vm1210, %v1006, %v1007
        %v1212 = vand.u32 %v1211, 65535
        %v1213 = vshra.s32 %v1211, 16
        %v1214 = vcvt.s32.f32 %v1212
        %v1215 = vcvt.s32.f32 %v1213
        %1216 = vmin.xlane.f32.xlu0 %v1215
        %v1217 = vpop.xlane.xlu0 %1216
        %vm1218 = vcmp.eq.f32.partialorder %v1215, %v1217
        %v1219 = vsel %vm1218, %v1214, inf
        %1220 = vmin.xlane.f32.xlu0 %v1219
        %v1221 = vpop.xlane.xlu0 %1220
        %v1222 = vcvt.f32.s32 %v1221
        %v1223 = vcvt.f32.s32 %v1217
        %v1224 = vshll.u32 %v1223, 16
        %v1225 = vadd.s32 %v1224, %v1222
        %vm1226 = vcmp.lt.s32.totalorder %v1008, %v1009
        %v1227 = vsel %vm1226, %v1008, %v1009
        %v1228 = vand.u32 %v1227, 65535
        %v1229 = vshra.s32 %v1227, 16
        %v1230 = vcvt.s32.f32 %v1228
        %v1231 = vcvt.s32.f32 %v1229
        %1232 = vmin.xlane.f32.xlu0 %v1231
        %v1233 = vpop.xlane.xlu0 %1232
        %vm1234 = vcmp.eq.f32.partialorder %v1231, %v1233
        %v1235 = vsel %vm1234, %v1230, inf
        %1236 = vmin.xlane.f32.xlu0 %v1235
        %v1237 = vpop.xlane.xlu0 %1236
        %v1238 = vcvt.f32.s32 %v1237
        %v1239 = vcvt.f32.s32 %v1233
        %v1240 = vshll.u32 %v1239, 16
        %v1241 = vadd.s32 %v1240, %v1238
        %vm1242 = vcmp.lt.s32.totalorder %v1010, %v1011
        %v1243 = vsel %vm1242, %v1010, %v1011
        %v1244 = vand.u32 %v1243, 65535
        %v1245 = vshra.s32 %v1243, 16
        %v1246 = vcvt.s32.f32 %v1244
        %v1247 = vcvt.s32.f32 %v1245
        %1248 = vmin.xlane.f32.xlu0 %v1247
        %v1249 = vpop.xlane.xlu0 %1248
        %vm1250 = vcmp.eq.f32.partialorder %v1247, %v1249
        %v1251 = vsel %vm1250, %v1246, inf
        %1252 = vmin.xlane.f32.xlu0 %v1251
        %v1253 = vpop.xlane.xlu0 %1252
        %v1254 = vcvt.f32.s32 %v1253
        %v1255 = vcvt.f32.s32 %v1249
        %v1256 = vshll.u32 %v1255, 16
        %v1257 = vadd.s32 %v1256, %v1254
        %vm1258 = vcmp.lt.s32.totalorder %v1012, %v1013
        %v1259 = vsel %vm1258, %v1012, %v1013
        %v1260 = vand.u32 %v1259, 65535
        %v1261 = vshra.s32 %v1259, 16
        %v1262 = vcvt.s32.f32 %v1260
        %v1263 = vcvt.s32.f32 %v1261
        %1264 = vmin.xlane.f32.xlu0 %v1263
        %v1265 = vpop.xlane.xlu0 %1264
        %vm1266 = vcmp.eq.f32.partialorder %v1263, %v1265
        %v1267 = vsel %vm1266, %v1262, inf
        %1268 = vmin.xlane.f32.xlu0 %v1267
        %v1269 = vpop.xlane.xlu0 %1268
        %v1270 = vcvt.f32.s32 %v1269
        %v1271 = vcvt.f32.s32 %v1265
        %v1272 = vshll.u32 %v1271, 16
        %v1273 = vadd.s32 %v1272, %v1270
        %vm1274 = vcmp.lt.s32.totalorder %v1014, %v1015
        %v1275 = vsel %vm1274, %v1014, %v1015
        %v1276 = vand.u32 %v1275, 65535
        %v1277 = vshra.s32 %v1275, 16
        %v1278 = vcvt.s32.f32 %v1276
        %v1279 = vcvt.s32.f32 %v1277
        %1280 = vmin.xlane.f32.xlu0 %v1279
        %v1281 = vpop.xlane.xlu0 %1280
        %vm1282 = vcmp.eq.f32.partialorder %v1279, %v1281
        %v1283 = vsel %vm1282, %v1278, inf
        %1284 = vmin.xlane.f32.xlu0 %v1283
        %v1285 = vpop.xlane.xlu0 %1284
        %v1286 = vcvt.f32.s32 %v1285
        %v1287 = vcvt.f32.s32 %v1281
        %v1288 = vshll.u32 %v1287, 16
        %v1289 = vadd.s32 %v1288, %v1286
        %vm1290 = vcmp.lt.s32.totalorder %v1016, %v1017
        %v1291 = vsel %vm1290, %v1016, %v1017
        %v1292 = vand.u32 %v1291, 65535
        %v1293 = vshra.s32 %v1291, 16
        %v1294 = vcvt.s32.f32 %v1292
        %v1295 = vcvt.s32.f32 %v1293
        %1296 = vmin.xlane.f32.xlu0 %v1295
        %v1297 = vpop.xlane.xlu0 %1296
        %vm1298 = vcmp.eq.f32.partialorder %v1295, %v1297
        %v1299 = vsel %vm1298, %v1294, inf
        %1300 = vmin.xlane.f32.xlu0 %v1299
        %v1301 = vpop.xlane.xlu0 %1300
        %v1302 = vcvt.f32.s32 %v1301
        %v1303 = vcvt.f32.s32 %v1297
        %v1304 = vshll.u32 %v1303, 16
        %v1305 = vadd.s32 %v1304, %v1302
        %vm1306 = vcmp.lt.s32.totalorder %v1018, %v1019
        %v1307 = vsel %vm1306, %v1018, %v1019
        %v1308 = vand.u32 %v1307, 65535
        %v1309 = vshra.s32 %v1307, 16
        %v1310 = vcvt.s32.f32 %v1308
        %v1311 = vcvt.s32.f32 %v1309
        %1312 = vmin.xlane.f32.xlu0 %v1311
        %v1313 = vpop.xlane.xlu0 %1312
        %vm1314 = vcmp.eq.f32.partialorder %v1311, %v1313
        %v1315 = vsel %vm1314, %v1310, inf
        %1316 = vmin.xlane.f32.xlu0 %v1315
        %v1317 = vpop.xlane.xlu0 %1316
        %v1318 = vcvt.f32.s32 %v1317
        %v1319 = vcvt.f32.s32 %v1313
        %v1320 = vshll.u32 %v1319, 16
        %v1321 = vadd.s32 %v1320, %v1318
        %vm1322 = vcmp.lt.s32.totalorder %v1020, %v1021
        %v1323 = vsel %vm1322, %v1020, %v1021
        %v1324 = vand.u32 %v1323, 65535
        %v1325 = vshra.s32 %v1323, 16
        %v1326 = vcvt.s32.f32 %v1324
        %v1327 = vcvt.s32.f32 %v1325
        %1328 = vmin.xlane.f32.xlu0 %v1327
        %v1329 = vpop.xlane.xlu0 %1328
        %vm1330 = vcmp.eq.f32.partialorder %v1327, %v1329
        %v1331 = vsel %vm1330, %v1326, inf
        %1332 = vmin.xlane.f32.xlu0 %v1331
        %v1333 = vpop.xlane.xlu0 %1332
        %v1334 = vcvt.f32.s32 %v1333
        %v1335 = vcvt.f32.s32 %v1329
        %v1336 = vshll.u32 %v1335, 16
        %v1337 = vadd.s32 %v1336, %v1334
        %vm1338 = vcmp.lt.s32.totalorder %v1022, %v1023
        %v1339 = vsel %vm1338, %v1022, %v1023
        %v1340 = vand.u32 %v1339, 65535
        %v1341 = vshra.s32 %v1339, 16
        %v1342 = vcvt.s32.f32 %v1340
        %v1343 = vcvt.s32.f32 %v1341
        %1344 = vmin.xlane.f32.xlu0 %v1343
        %v1345 = vpop.xlane.xlu0 %1344
        %vm1346 = vcmp.eq.f32.partialorder %v1343, %v1345
        %v1347 = vsel %vm1346, %v1342, inf
        %1348 = vmin.xlane.f32.xlu0 %v1347
        %v1349 = vpop.xlane.xlu0 %1348
        %v1350 = vcvt.f32.s32 %v1349
        %v1351 = vcvt.f32.s32 %v1345
        %v1352 = vshll.u32 %v1351, 16
        %v1353 = vadd.s32 %v1352, %v1350
        %vm1354 = vcmp.lt.s32.totalorder %v1024, %v1025
        %v1355 = vsel %vm1354, %v1024, %v1025
        %v1356 = vand.u32 %v1355, 65535
        %v1357 = vshra.s32 %v1355, 16
        %v1358 = vcvt.s32.f32 %v1356
        %v1359 = vcvt.s32.f32 %v1357
        %1360 = vmin.xlane.f32.xlu0 %v1359
        %v1361 = vpop.xlane.xlu0 %1360
        %vm1362 = vcmp.eq.f32.partialorder %v1359, %v1361
        %v1363 = vsel %vm1362, %v1358, inf
        %1364 = vmin.xlane.f32.xlu0 %v1363
        %v1365 = vpop.xlane.xlu0 %1364
        %v1366 = vcvt.f32.s32 %v1365
        %v1367 = vcvt.f32.s32 %v1361
        %v1368 = vshll.u32 %v1367, 16
        %v1369 = vadd.s32 %v1368, %v1366
        %vm1370 = vcmp.lt.s32.totalorder %v1026, %v1027
        %v1371 = vsel %vm1370, %v1026, %v1027
        %v1372 = vand.u32 %v1371, 65535
        %v1373 = vshra.s32 %v1371, 16
        %v1374 = vcvt.s32.f32 %v1372
        %v1375 = vcvt.s32.f32 %v1373
        %1376 = vmin.xlane.f32.xlu0 %v1375
        %v1377 = vpop.xlane.xlu0 %1376
        %vm1378 = vcmp.eq.f32.partialorder %v1375, %v1377
        %v1379 = vsel %vm1378, %v1374, inf
        %1380 = vmin.xlane.f32.xlu0 %v1379
        %v1381 = vpop.xlane.xlu0 %1380
        %v1382 = vcvt.f32.s32 %v1381
        %v1383 = vcvt.f32.s32 %v1377
        %v1384 = vshll.u32 %v1383, 16
        %v1385 = vadd.s32 %v1384, %v1382
        %vm1386 = vcmp.lt.s32.totalorder %v1028, %v1029
        %v1387 = vsel %vm1386, %v1028, %v1029
        %v1388 = vand.u32 %v1387, 65535
        %v1389 = vshra.s32 %v1387, 16
        %v1390 = vcvt.s32.f32 %v1388
        %v1391 = vcvt.s32.f32 %v1389
        %1392 = vmin.xlane.f32.xlu0 %v1391
        %v1393 = vpop.xlane.xlu0 %1392
        %vm1394 = vcmp.eq.f32.partialorder %v1391, %v1393
        %v1395 = vsel %vm1394, %v1390, inf
        %1396 = vmin.xlane.f32.xlu0 %v1395
        %v1397 = vpop.xlane.xlu0 %1396
        %v1398 = vcvt.f32.s32 %v1397
        %v1399 = vcvt.f32.s32 %v1393
        %v1400 = vshll.u32 %v1399, 16
        %v1401 = vadd.s32 %v1400, %v1398
        %vm1402 = vcmp.lt.s32.totalorder %v1030, %v1031
        %v1403 = vsel %vm1402, %v1030, %v1031
        %v1404 = vand.u32 %v1403, 65535
        %v1405 = vshra.s32 %v1403, 16
        %v1406 = vcvt.s32.f32 %v1404
        %v1407 = vcvt.s32.f32 %v1405
        %1408 = vmin.xlane.f32.xlu0 %v1407
        %v1409 = vpop.xlane.xlu0 %1408
        %vm1410 = vcmp.eq.f32.partialorder %v1407, %v1409
        %v1411 = vsel %vm1410, %v1406, inf
        %1412 = vmin.xlane.f32.xlu0 %v1411
        %v1413 = vpop.xlane.xlu0 %1412
        %v1414 = vcvt.f32.s32 %v1413
        %v1415 = vcvt.f32.s32 %v1409
        %v1416 = vshll.u32 %v1415, 16
        %v1417 = vadd.s32 %v1416, %v1414
        %vm1418 = vcmp.lt.s32.totalorder %v1032, %v1033
        %v1419 = vsel %vm1418, %v1032, %v1033
        %v1420 = vand.u32 %v1419, 65535
        %v1421 = vshra.s32 %v1419, 16
        %v1422 = vcvt.s32.f32 %v1420
        %v1423 = vcvt.s32.f32 %v1421
        %1424 = vmin.xlane.f32.xlu0 %v1423
        %v1425 = vpop.xlane.xlu0 %1424
        %vm1426 = vcmp.eq.f32.partialorder %v1423, %v1425
        %v1427 = vsel %vm1426, %v1422, inf
        %1428 = vmin.xlane.f32.xlu0 %v1427
        %v1429 = vpop.xlane.xlu0 %1428
        %v1430 = vcvt.f32.s32 %v1429
        %v1431 = vcvt.f32.s32 %v1425
        %v1432 = vshll.u32 %v1431, 16
        %v1433 = vadd.s32 %v1432, %v1430
        %vm1434 = vcmp.lt.s32.totalorder %v1034, %v1035
        %v1435 = vsel %vm1434, %v1034, %v1035
        %v1436 = vand.u32 %v1435, 65535
        %v1437 = vshra.s32 %v1435, 16
        %v1438 = vcvt.s32.f32 %v1436
        %v1439 = vcvt.s32.f32 %v1437
        %1440 = vmin.xlane.f32.xlu0 %v1439
        %v1441 = vpop.xlane.xlu0 %1440
        %vm1442 = vcmp.eq.f32.partialorder %v1439, %v1441
        %v1443 = vsel %vm1442, %v1438, inf
        %1444 = vmin.xlane.f32.xlu0 %v1443
        %v1445 = vpop.xlane.xlu0 %1444
        %v1446 = vcvt.f32.s32 %v1445
        %v1447 = vcvt.f32.s32 %v1441
        %v1448 = vshll.u32 %v1447, 16
        %v1449 = vadd.s32 %v1448, %v1446
        %vm1450 = vcmp.lt.s32.totalorder %v1036, %v1037
        %v1451 = vsel %vm1450, %v1036, %v1037
        %v1452 = vand.u32 %v1451, 65535
        %v1453 = vshra.s32 %v1451, 16
        %v1454 = vcvt.s32.f32 %v1452
        %v1455 = vcvt.s32.f32 %v1453
        %1456 = vmin.xlane.f32.xlu0 %v1455
        %v1457 = vpop.xlane.xlu0 %1456
        %vm1458 = vcmp.eq.f32.partialorder %v1455, %v1457
        %v1459 = vsel %vm1458, %v1454, inf
        %1460 = vmin.xlane.f32.xlu0 %v1459
        %v1461 = vpop.xlane.xlu0 %1460
        %v1462 = vcvt.f32.s32 %v1461
        %v1463 = vcvt.f32.s32 %v1457
        %v1464 = vshll.u32 %v1463, 16
        %v1465 = vadd.s32 %v1464, %v1462
        %vm1466 = vcmp.lt.s32.totalorder %v1038, %v1039
        %v1467 = vsel %vm1466, %v1038, %v1039
        %v1468 = vand.u32 %v1467, 65535
        %v1469 = vshra.s32 %v1467, 16
        %v1470 = vcvt.s32.f32 %v1468
        %v1471 = vcvt.s32.f32 %v1469
        %1472 = vmin.xlane.f32.xlu0 %v1471
        %v1473 = vpop.xlane.xlu0 %1472
        %vm1474 = vcmp.eq.f32.partialorder %v1471, %v1473
        %v1475 = vsel %vm1474, %v1470, inf
        %1476 = vmin.xlane.f32.xlu0 %v1475
        %v1477 = vpop.xlane.xlu0 %1476
        %v1478 = vcvt.f32.s32 %v1477
        %v1479 = vcvt.f32.s32 %v1473
        %v1480 = vshll.u32 %v1479, 16
        %v1481 = vadd.s32 %v1480, %v1478
        %vm1482 = vcmp.lt.s32.totalorder %v1040, %v1041
        %v1483 = vsel %vm1482, %v1040, %v1041
        %v1484 = vand.u32 %v1483, 65535
        %v1485 = vshra.s32 %v1483, 16
        %v1486 = vcvt.s32.f32 %v1484
        %v1487 = vcvt.s32.f32 %v1485
        %1488 = vmin.xlane.f32.xlu0 %v1487
        %v1489 = vpop.xlane.xlu0 %1488
        %vm1490 = vcmp.eq.f32.partialorder %v1487, %v1489
        %v1491 = vsel %vm1490, %v1486, inf
        %1492 = vmin.xlane.f32.xlu0 %v1491
        %v1493 = vpop.xlane.xlu0 %1492
        %v1494 = vcvt.f32.s32 %v1493
        %v1495 = vcvt.f32.s32 %v1489
        %v1496 = vshll.u32 %v1495, 16
        %v1497 = vadd.s32 %v1496, %v1494
        %vm1498 = vcmp.lt.s32.totalorder %v1042, %v1043
        %v1499 = vsel %vm1498, %v1042, %v1043
        %v1500 = vand.u32 %v1499, 65535
        %v1501 = vshra.s32 %v1499, 16
        %v1502 = vcvt.s32.f32 %v1500
        %v1503 = vcvt.s32.f32 %v1501
        %1504 = vmin.xlane.f32.xlu0 %v1503
        %v1505 = vpop.xlane.xlu0 %1504
        %vm1506 = vcmp.eq.f32.partialorder %v1503, %v1505
        %v1507 = vsel %vm1506, %v1502, inf
        %1508 = vmin.xlane.f32.xlu0 %v1507
        %v1509 = vpop.xlane.xlu0 %1508
        %v1510 = vcvt.f32.s32 %v1509
        %v1511 = vcvt.f32.s32 %v1505
        %v1512 = vshll.u32 %v1511, 16
        %v1513 = vadd.s32 %v1512, %v1510
        %vm1514 = vcmp.lt.s32.totalorder %v1044, %v1045
        %v1515 = vsel %vm1514, %v1044, %v1045
        %v1516 = vand.u32 %v1515, 65535
        %v1517 = vshra.s32 %v1515, 16
        %v1518 = vcvt.s32.f32 %v1516
        %v1519 = vcvt.s32.f32 %v1517
        %1520 = vmin.xlane.f32.xlu0 %v1519
        %v1521 = vpop.xlane.xlu0 %1520
        %vm1522 = vcmp.eq.f32.partialorder %v1519, %v1521
        %v1523 = vsel %vm1522, %v1518, inf
        %1524 = vmin.xlane.f32.xlu0 %v1523
        %v1525 = vpop.xlane.xlu0 %1524
        %v1526 = vcvt.f32.s32 %v1525
        %v1527 = vcvt.f32.s32 %v1521
        %v1528 = vshll.u32 %v1527, 16
        %v1529 = vadd.s32 %v1528, %v1526
        %vm1530 = vcmp.lt.s32.totalorder %v1046, %v1047
        %v1531 = vsel %vm1530, %v1046, %v1047
        %v1532 = vand.u32 %v1531, 65535
        %v1533 = vshra.s32 %v1531, 16
        %v1534 = vcvt.s32.f32 %v1532
        %v1535 = vcvt.s32.f32 %v1533
        %1536 = vmin.xlane.f32.xlu0 %v1535
        %v1537 = vpop.xlane.xlu0 %1536
        %vm1538 = vcmp.eq.f32.partialorder %v1535, %v1537
        %v1539 = vsel %vm1538, %v1534, inf
        %1540 = vmin.xlane.f32.xlu0 %v1539
        %v1541 = vpop.xlane.xlu0 %1540
        %v1542 = vcvt.f32.s32 %v1541
        %v1543 = vcvt.f32.s32 %v1537
        %v1544 = vshll.u32 %v1543, 16
        %v1545 = vadd.s32 %v1544, %v1542
        %vm1546 = vcmp.lt.s32.totalorder %v1048, %v1049
        %v1547 = vsel %vm1546, %v1048, %v1049
        %v1548 = vand.u32 %v1547, 65535
        %v1549 = vshra.s32 %v1547, 16
        %v1550 = vcvt.s32.f32 %v1548
        %v1551 = vcvt.s32.f32 %v1549
        %1552 = vmin.xlane.f32.xlu0 %v1551
        %v1553 = vpop.xlane.xlu0 %1552
        %vm1554 = vcmp.eq.f32.partialorder %v1551, %v1553
        %v1555 = vsel %vm1554, %v1550, inf
        %1556 = vmin.xlane.f32.xlu0 %v1555
        %v1557 = vpop.xlane.xlu0 %1556
        %v1558 = vcvt.f32.s32 %v1557
        %v1559 = vcvt.f32.s32 %v1553
        %v1560 = vshll.u32 %v1559, 16
        %v1561 = vadd.s32 %v1560, %v1558
        %v1562 = vadd.s32 %v1065, %v757
        %v1563 = vadd.s32 %v1081, %v757
        %v1564 = vadd.s32 %v1097, %v757
        %v1565 = vadd.s32 %v1113, %v757
        %v1566 = vadd.s32 %v1129, %v757
        %v1567 = vadd.s32 %v1145, %v757
        %v1568 = vadd.s32 %v1161, %v757
        %v1569 = vadd.s32 %v1177, %v757
        %v1570 = vadd.s32 %v1193, %v757
        %v1571 = vadd.s32 %v1209, %v757
        %v1572 = vadd.s32 %v1225, %v757
        %v1573 = vadd.s32 %v1241, %v757
        %v1574 = vadd.s32 %v1257, %v757
        %v1575 = vadd.s32 %v1273, %v757
        %v1576 = vadd.s32 %v1289, %v757
        %v1577 = vadd.s32 %v1305, %v757
        %v1578 = vadd.s32 %v1321, %v757
        %v1579 = vadd.s32 %v1337, %v757
        %v1580 = vadd.s32 %v1353, %v757
        %v1581 = vadd.s32 %v1369, %v757
        %v1582 = vadd.s32 %v1385, %v757
        %v1583 = vadd.s32 %v1401, %v757
        %v1584 = vadd.s32 %v1417, %v757
        %v1585 = vadd.s32 %v1433, %v757
        %v1586 = vadd.s32 %v1449, %v757
        %v1587 = vadd.s32 %v1465, %v757
        %v1588 = vadd.s32 %v1481, %v757
        %v1589 = vadd.s32 %v1497, %v757
        %v1590 = vadd.s32 %v1513, %v757
        %v1591 = vadd.s32 %v1529, %v757
        %v1592 = vadd.s32 %v1545, %v757
        %v1593 = vadd.s32 %v1561, %v757
        %v1594 = vld [vmem:[#allocation2] sm:$0xff]
        %v1595 = vld [vmem:[#allocation2 + $0x8] sm:$0xff]
        %v1596 = vld [vmem:[#allocation2 + $0x10] sm:$0xff]
        %v1597 = vld [vmem:[#allocation2 + $0x18] sm:$0xff]
        %v1598 = vld [vmem:[#allocation2 + $0x20] sm:$0xff]
        %v1599 = vld [vmem:[#allocation2 + $0x28] sm:$0xff]
        %v1600 = vld [vmem:[#allocation2 + $0x30] sm:$0xff]
        %v1601 = vld [vmem:[#allocation2 + $0x38] sm:$0xff]
        %v1602 = vld [vmem:[#allocation2 + $0x40] sm:$0xff]
        %v1603 = vld [vmem:[#allocation2 + $0x48] sm:$0xff]
        %v1604 = vld [vmem:[#allocation2 + $0x50] sm:$0xff]
        %v1605 = vld [vmem:[#allocation2 + $0x58] sm:$0xff]
        %v1606 = vld [vmem:[#allocation2 + $0x60] sm:$0xff]
        %v1607 = vld [vmem:[#allocation2 + $0x68] sm:$0xff]
        %v1608 = vld [vmem:[#allocation2 + $0x70] sm:$0xff]
        %v1609 = vld [vmem:[#allocation2 + $0x78] sm:$0xff]
        %v1610 = vld [vmem:[#allocation2 + $0x80] sm:$0xff]
        %v1611 = vld [vmem:[#allocation2 + $0x88] sm:$0xff]
        %v1612 = vld [vmem:[#allocation2 + $0x90] sm:$0xff]
        %v1613 = vld [vmem:[#allocation2 + $0x98] sm:$0xff]
        %v1614 = vld [vmem:[#allocation2 + $0xa0] sm:$0xff]
        %v1615 = vld [vmem:[#allocation2 + $0xa8] sm:$0xff]
        %v1616 = vld [vmem:[#allocation2 + $0xb0] sm:$0xff]
        %v1617 = vld [vmem:[#allocation2 + $0xb8] sm:$0xff]
        %v1618 = vld [vmem:[#allocation2 + $0xc0] sm:$0xff]
        %v1619 = vld [vmem:[#allocation2 + $0xc8] sm:$0xff]
        %v1620 = vld [vmem:[#allocation2 + $0xd0] sm:$0xff]
        %v1621 = vld [vmem:[#allocation2 + $0xd8] sm:$0xff]
        %v1622 = vld [vmem:[#allocation2 + $0xe0] sm:$0xff]
        %v1623 = vld [vmem:[#allocation2 + $0xe8] sm:$0xff]
        %v1624 = vld [vmem:[#allocation2 + $0xf0] sm:$0xff]
        %v1625 = vld [vmem:[#allocation2 + $0xf8] sm:$0xff]
        %vm1626 = vcmp.gt.f32.partialorder %v828, %v1594
        %vm1627 = vcmp.gt.f32.partialorder %v831, %v1595
        %vm1628 = vcmp.gt.f32.partialorder %v834, %v1596
        %vm1629 = vcmp.gt.f32.partialorder %v837, %v1597
        %vm1630 = vcmp.gt.f32.partialorder %v840, %v1598
        %vm1631 = vcmp.gt.f32.partialorder %v843, %v1599
        %vm1632 = vcmp.gt.f32.partialorder %v846, %v1600
        %vm1633 = vcmp.gt.f32.partialorder %v849, %v1601
        %vm1634 = vcmp.gt.f32.partialorder %v852, %v1602
        %vm1635 = vcmp.gt.f32.partialorder %v855, %v1603
        %vm1636 = vcmp.gt.f32.partialorder %v858, %v1604
        %vm1637 = vcmp.gt.f32.partialorder %v861, %v1605
        %vm1638 = vcmp.gt.f32.partialorder %v864, %v1606
        %vm1639 = vcmp.gt.f32.partialorder %v867, %v1607
        %vm1640 = vcmp.gt.f32.partialorder %v870, %v1608
        %vm1641 = vcmp.gt.f32.partialorder %v873, %v1609
        %vm1642 = vcmp.gt.f32.partialorder %v876, %v1610
        %vm1643 = vcmp.gt.f32.partialorder %v879, %v1611
        %vm1644 = vcmp.gt.f32.partialorder %v882, %v1612
        %vm1645 = vcmp.gt.f32.partialorder %v885, %v1613
        %vm1646 = vcmp.gt.f32.partialorder %v888, %v1614
        %vm1647 = vcmp.gt.f32.partialorder %v891, %v1615
        %vm1648 = vcmp.gt.f32.partialorder %v894, %v1616
        %vm1649 = vcmp.gt.f32.partialorder %v897, %v1617
        %vm1650 = vcmp.gt.f32.partialorder %v900, %v1618
        %vm1651 = vcmp.gt.f32.partialorder %v903, %v1619
        %vm1652 = vcmp.gt.f32.partialorder %v906, %v1620
        %vm1653 = vcmp.gt.f32.partialorder %v909, %v1621
        %vm1654 = vcmp.gt.f32.partialorder %v912, %v1622
        %vm1655 = vcmp.gt.f32.partialorder %v915, %v1623
        %vm1656 = vcmp.gt.f32.partialorder %v918, %v1624
        %vm1657 = vcmp.gt.f32.partialorder %v921, %v1625
        %v1658 = vld [vmem:[#allocation3] sm:$0xff]
        %v1659 = vld [vmem:[#allocation3 + $0x8] sm:$0xff]
        %v1660 = vld [vmem:[#allocation3 + $0x10] sm:$0xff]
        %v1661 = vld [vmem:[#allocation3 + $0x18] sm:$0xff]
        %v1662 = vld [vmem:[#allocation3 + $0x20] sm:$0xff]
        %v1663 = vld [vmem:[#allocation3 + $0x28] sm:$0xff]
        %v1664 = vld [vmem:[#allocation3 + $0x30] sm:$0xff]
        %v1665 = vld [vmem:[#allocation3 + $0x38] sm:$0xff]
        %v1666 = vld [vmem:[#allocation3 + $0x40] sm:$0xff]
        %v1667 = vld [vmem:[#allocation3 + $0x48] sm:$0xff]
        %v1668 = vld [vmem:[#allocation3 + $0x50] sm:$0xff]
        %v1669 = vld [vmem:[#allocation3 + $0x58] sm:$0xff]
        %v1670 = vld [vmem:[#allocation3 + $0x60] sm:$0xff]
        %v1671 = vld [vmem:[#allocation3 + $0x68] sm:$0xff]
        %v1672 = vld [vmem:[#allocation3 + $0x70] sm:$0xff]
        %v1673 = vld [vmem:[#allocation3 + $0x78] sm:$0xff]
        %v1674 = vld [vmem:[#allocation3 + $0x80] sm:$0xff]
        %v1675 = vld [vmem:[#allocation3 + $0x88] sm:$0xff]
        %v1676 = vld [vmem:[#allocation3 + $0x90] sm:$0xff]
        %v1677 = vld [vmem:[#allocation3 + $0x98] sm:$0xff]
        %v1678 = vld [vmem:[#allocation3 + $0xa0] sm:$0xff]
        %v1679 = vld [vmem:[#allocation3 + $0xa8] sm:$0xff]
        %v1680 = vld [vmem:[#allocation3 + $0xb0] sm:$0xff]
        %v1681 = vld [vmem:[#allocation3 + $0xb8] sm:$0xff]
        %v1682 = vld [vmem:[#allocation3 + $0xc0] sm:$0xff]
        %v1683 = vld [vmem:[#allocation3 + $0xc8] sm:$0xff]
        %v1684 = vld [vmem:[#allocation3 + $0xd0] sm:$0xff]
        %v1685 = vld [vmem:[#allocation3 + $0xd8] sm:$0xff]
        %v1686 = vld [vmem:[#allocation3 + $0xe0] sm:$0xff]
        %v1687 = vld [vmem:[#allocation3 + $0xe8] sm:$0xff]
        %v1688 = vld [vmem:[#allocation3 + $0xf0] sm:$0xff]
        %v1689 = vld [vmem:[#allocation3 + $0xf8] sm:$0xff]
        %v1690 = vsel %vm1626, %v1562, %v1658
        %v1691 = vsel %vm1627, %v1563, %v1659
        %v1692 = vsel %vm1628, %v1564, %v1660
        %v1693 = vsel %vm1629, %v1565, %v1661
        %v1694 = vsel %vm1630, %v1566, %v1662
        %v1695 = vsel %vm1631, %v1567, %v1663
        %v1696 = vsel %vm1632, %v1568, %v1664
        %v1697 = vsel %vm1633, %v1569, %v1665
        %v1698 = vsel %vm1634, %v1570, %v1666
        %v1699 = vsel %vm1635, %v1571, %v1667
        %v1700 = vsel %vm1636, %v1572, %v1668
        %v1701 = vsel %vm1637, %v1573, %v1669
        %v1702 = vsel %vm1638, %v1574, %v1670
        %v1703 = vsel %vm1639, %v1575, %v1671
        %v1704 = vsel %vm1640, %v1576, %v1672
        %v1705 = vsel %vm1641, %v1577, %v1673
        %v1706 = vsel %vm1642, %v1578, %v1674
        %v1707 = vsel %vm1643, %v1579, %v1675
        %v1708 = vsel %vm1644, %v1580, %v1676
        %v1709 = vsel %vm1645, %v1581, %v1677
        %v1710 = vsel %vm1646, %v1582, %v1678
        %v1711 = vsel %vm1647, %v1583, %v1679
        %v1712 = vsel %vm1648, %v1584, %v1680
        %v1713 = vsel %vm1649, %v1585, %v1681
        %v1714 = vsel %vm1650, %v1586, %v1682
        %v1715 = vsel %vm1651, %v1587, %v1683
        %v1716 = vsel %vm1652, %v1588, %v1684
        %v1717 = vsel %vm1653, %v1589, %v1685
        %v1718 = vsel %vm1654, %v1590, %v1686
        %v1719 = vsel %vm1655, %v1591, %v1687
        %v1720 = vsel %vm1656, %v1592, %v1688
        %v1721 = vsel %vm1657, %v1593, %v1689
        %vm1722 = vcmask 7168
        %1723 = vst.msk [vmem:[#allocation3] sm:$0xff] %vm1722, %v1690
        %1724 = vst.msk [vmem:[#allocation3 + $0x8] sm:$0xff] %vm1722, %v1691
        %1725 = vst.msk [vmem:[#allocation3 + $0x10] sm:$0xff] %vm1722, %v1692
        %1726 = vst.msk [vmem:[#allocation3 + $0x18] sm:$0xff] %vm1722, %v1693
        %1727 = vst.msk [vmem:[#allocation3 + $0x20] sm:$0xff] %vm1722, %v1694
        %1728 = vst.msk [vmem:[#allocation3 + $0x28] sm:$0xff] %vm1722, %v1695
        %1729 = vst.msk [vmem:[#allocation3 + $0x30] sm:$0xff] %vm1722, %v1696
        %1730 = vst.msk [vmem:[#allocation3 + $0x38] sm:$0xff] %vm1722, %v1697
        %1731 = vst.msk [vmem:[#allocation3 + $0x40] sm:$0xff] %vm1722, %v1698
        %1732 = vst.msk [vmem:[#allocation3 + $0x48] sm:$0xff] %vm1722, %v1699
        %1733 = vst.msk [vmem:[#allocation3 + $0x50] sm:$0xff] %vm1722, %v1700
        %1734 = vst.msk [vmem:[#allocation3 + $0x58] sm:$0xff] %vm1722, %v1701
        %1735 = vst.msk [vmem:[#allocation3 + $0x60] sm:$0xff] %vm1722, %v1702
        %1736 = vst.msk [vmem:[#allocation3 + $0x68] sm:$0xff] %vm1722, %v1703
        %1737 = vst.msk [vmem:[#allocation3 + $0x70] sm:$0xff] %vm1722, %v1704
        %1738 = vst.msk [vmem:[#allocation3 + $0x78] sm:$0xff] %vm1722, %v1705
        %1739 = vst.msk [vmem:[#allocation3 + $0x80] sm:$0xff] %vm1722, %v1706
        %1740 = vst.msk [vmem:[#allocation3 + $0x88] sm:$0xff] %vm1722, %v1707
        %1741 = vst.msk [vmem:[#allocation3 + $0x90] sm:$0xff] %vm1722, %v1708
        %1742 = vst.msk [vmem:[#allocation3 + $0x98] sm:$0xff] %vm1722, %v1709
        %1743 = vst.msk [vmem:[#allocation3 + $0xa0] sm:$0xff] %vm1722, %v1710
        %1744 = vst.msk [vmem:[#allocation3 + $0xa8] sm:$0xff] %vm1722, %v1711
        %1745 = vst.msk [vmem:[#allocation3 + $0xb0] sm:$0xff] %vm1722, %v1712
        %1746 = vst.msk [vmem:[#allocation3 + $0xb8] sm:$0xff] %vm1722, %v1713
        %1747 = vst.msk [vmem:[#allocation3 + $0xc0] sm:$0xff] %vm1722, %v1714
        %1748 = vst.msk [vmem:[#allocation3 + $0xc8] sm:$0xff] %vm1722, %v1715
        %1749 = vst.msk [vmem:[#allocation3 + $0xd0] sm:$0xff] %vm1722, %v1716
        %1750 = vst.msk [vmem:[#allocation3 + $0xd8] sm:$0xff] %vm1722, %v1717
        %1751 = vst.msk [vmem:[#allocation3 + $0xe0] sm:$0xff] %vm1722, %v1718
        %1752 = vst.msk [vmem:[#allocation3 + $0xe8] sm:$0xff] %vm1722, %v1719
        %1753 = vst.msk [vmem:[#allocation3 + $0xf0] sm:$0xff] %vm1722, %v1720
        %1754 = vst.msk [vmem:[#allocation3 + $0xf8] sm:$0xff] %vm1722, %v1721
        %v1755 = vld [vmem:[#allocation2] sm:$0xff]
        %v1756 = vld [vmem:[#allocation2 + $0x8] sm:$0xff]
        %v1757 = vld [vmem:[#allocation2 + $0x10] sm:$0xff]
        %v1758 = vld [vmem:[#allocation2 + $0x18] sm:$0xff]
        %v1759 = vld [vmem:[#allocation2 + $0x20] sm:$0xff]
        %v1760 = vld [vmem:[#allocation2 + $0x28] sm:$0xff]
        %v1761 = vld [vmem:[#allocation2 + $0x30] sm:$0xff]
        %v1762 = vld [vmem:[#allocation2 + $0x38] sm:$0xff]
        %v1763 = vld [vmem:[#allocation2 + $0x40] sm:$0xff]
        %v1764 = vld [vmem:[#allocation2 + $0x48] sm:$0xff]
        %v1765 = vld [vmem:[#allocation2 + $0x50] sm:$0xff]
        %v1766 = vld [vmem:[#allocation2 + $0x58] sm:$0xff]
        %v1767 = vld [vmem:[#allocation2 + $0x60] sm:$0xff]
        %v1768 = vld [vmem:[#allocation2 + $0x68] sm:$0xff]
        %v1769 = vld [vmem:[#allocation2 + $0x70] sm:$0xff]
        %v1770 = vld [vmem:[#allocation2 + $0x78] sm:$0xff]
        %v1771 = vld [vmem:[#allocation2 + $0x80] sm:$0xff]
        %v1772 = vld [vmem:[#allocation2 + $0x88] sm:$0xff]
        %v1773 = vld [vmem:[#allocation2 + $0x90] sm:$0xff]
        %v1774 = vld [vmem:[#allocation2 + $0x98] sm:$0xff]
        %v1775 = vld [vmem:[#allocation2 + $0xa0] sm:$0xff]
        %v1776 = vld [vmem:[#allocation2 + $0xa8] sm:$0xff]
        %v1777 = vld [vmem:[#allocation2 + $0xb0] sm:$0xff]
        %v1778 = vld [vmem:[#allocation2 + $0xb8] sm:$0xff]
        %v1779 = vld [vmem:[#allocation2 + $0xc0] sm:$0xff]
        %v1780 = vld [vmem:[#allocation2 + $0xc8] sm:$0xff]
        %v1781 = vld [vmem:[#allocation2 + $0xd0] sm:$0xff]
        %v1782 = vld [vmem:[#allocation2 + $0xd8] sm:$0xff]
        %v1783 = vld [vmem:[#allocation2 + $0xe0] sm:$0xff]
        %v1784 = vld [vmem:[#allocation2 + $0xe8] sm:$0xff]
        %v1785 = vld [vmem:[#allocation2 + $0xf0] sm:$0xff]
        %v1786 = vld [vmem:[#allocation2 + $0xf8] sm:$0xff]
        %v1787 = vsel %vm1626, %v828, %v1755
        %v1788 = vsel %vm1627, %v831, %v1756
        %v1789 = vsel %vm1628, %v834, %v1757
        %v1790 = vsel %vm1629, %v837, %v1758
        %v1791 = vsel %vm1630, %v840, %v1759
        %v1792 = vsel %vm1631, %v843, %v1760
        %v1793 = vsel %vm1632, %v846, %v1761
        %v1794 = vsel %vm1633, %v849, %v1762
        %v1795 = vsel %vm1634, %v852, %v1763
        %v1796 = vsel %vm1635, %v855, %v1764
        %v1797 = vsel %vm1636, %v858, %v1765
        %v1798 = vsel %vm1637, %v861, %v1766
        %v1799 = vsel %vm1638, %v864, %v1767
        %v1800 = vsel %vm1639, %v867, %v1768
        %v1801 = vsel %vm1640, %v870, %v1769
        %v1802 = vsel %vm1641, %v873, %v1770
        %v1803 = vsel %vm1642, %v876, %v1771
        %v1804 = vsel %vm1643, %v879, %v1772
        %v1805 = vsel %vm1644, %v882, %v1773
        %v1806 = vsel %vm1645, %v885, %v1774
        %v1807 = vsel %vm1646, %v888, %v1775
        %v1808 = vsel %vm1647, %v891, %v1776
        %v1809 = vsel %vm1648, %v894, %v1777
        %v1810 = vsel %vm1649, %v897, %v1778
        %v1811 = vsel %vm1650, %v900, %v1779
        %v1812 = vsel %vm1651, %v903, %v1780
        %v1813 = vsel %vm1652, %v906, %v1781
        %v1814 = vsel %vm1653, %v909, %v1782
        %v1815 = vsel %vm1654, %v912, %v1783
        %v1816 = vsel %vm1655, %v915, %v1784
        %v1817 = vsel %vm1656, %v918, %v1785
        %v1818 = vsel %vm1657, %v921, %v1786
        %1819 = vst.msk [vmem:[#allocation2] sm:$0xff] %vm1722, %v1787
        %1820 = vst.msk [vmem:[#allocation2 + $0x8] sm:$0xff] %vm1722, %v1788
        %1821 = vst.msk [vmem:[#allocation2 + $0x10] sm:$0xff] %vm1722, %v1789
        %1822 = vst.msk [vmem:[#allocation2 + $0x18] sm:$0xff] %vm1722, %v1790
        %1823 = vst.msk [vmem:[#allocation2 + $0x20] sm:$0xff] %vm1722, %v1791
        %1824 = vst.msk [vmem:[#allocation2 + $0x28] sm:$0xff] %vm1722, %v1792
        %1825 = vst.msk [vmem:[#allocation2 + $0x30] sm:$0xff] %vm1722, %v1793
        %1826 = vst.msk [vmem:[#allocation2 + $0x38] sm:$0xff] %vm1722, %v1794
        %1827 = vst.msk [vmem:[#allocation2 + $0x40] sm:$0xff] %vm1722, %v1795
        %1828 = vst.msk [vmem:[#allocation2 + $0x48] sm:$0xff] %vm1722, %v1796
        %1829 = vst.msk [vmem:[#allocation2 + $0x50] sm:$0xff] %vm1722, %v1797
        %1830 = vst.msk [vmem:[#allocation2 + $0x58] sm:$0xff] %vm1722, %v1798
        %1831 = vst.msk [vmem:[#allocation2 + $0x60] sm:$0xff] %vm1722, %v1799
        %1832 = vst.msk [vmem:[#allocation2 + $0x68] sm:$0xff] %vm1722, %v1800
        %1833 = vst.msk [vmem:[#allocation2 + $0x70] sm:$0xff] %vm1722, %v1801
        %1834 = vst.msk [vmem:[#allocation2 + $0x78] sm:$0xff] %vm1722, %v1802
        %1835 = vst.msk [vmem:[#allocation2 + $0x80] sm:$0xff] %vm1722, %v1803
        %1836 = vst.msk [vmem:[#allocation2 + $0x88] sm:$0xff] %vm1722, %v1804
        %1837 = vst.msk [vmem:[#allocation2 + $0x90] sm:$0xff] %vm1722, %v1805
        %1838 = vst.msk [vmem:[#allocation2 + $0x98] sm:$0xff] %vm1722, %v1806
        %1839 = vst.msk [vmem:[#allocation2 + $0xa0] sm:$0xff] %vm1722, %v1807
        %1840 = vst.msk [vmem:[#allocation2 + $0xa8] sm:$0xff] %vm1722, %v1808
        %1841 = vst.msk [vmem:[#allocation2 + $0xb0] sm:$0xff] %vm1722, %v1809
        %1842 = vst.msk [vmem:[#allocation2 + $0xb8] sm:$0xff] %vm1722, %v1810
        %1843 = vst.msk [vmem:[#allocation2 + $0xc0] sm:$0xff] %vm1722, %v1811
        %1844 = vst.msk [vmem:[#allocation2 + $0xc8] sm:$0xff] %vm1722, %v1812
        %1845 = vst.msk [vmem:[#allocation2 + $0xd0] sm:$0xff] %vm1722, %v1813
        %1846 = vst.msk [vmem:[#allocation2 + $0xd8] sm:$0xff] %vm1722, %v1814
        %1847 = vst.msk [vmem:[#allocation2 + $0xe0] sm:$0xff] %vm1722, %v1815
        %1848 = vst.msk [vmem:[#allocation2 + $0xe8] sm:$0xff] %vm1722, %v1816
        %1849 = vst.msk [vmem:[#allocation2 + $0xf0] sm:$0xff] %vm1722, %v1817
        %1850 = vst.msk [vmem:[#allocation2 + $0xf8] sm:$0xff] %vm1722, %v1818
        // Predicated region
        $region41: #{tpu_custom_call.1} parent=27 // pred_check
          %p1851 = pneg %p235
        $region42: #{tpu_custom_call.1} parent=27 // pred_check_branch
          %1853 = sbr.rel (%p1851) target = $region44
        $region43: #{tpu_custom_call.1} parent=27 // pred_region
          %v1854 = vld [vmem:[#allocation3] sm:$0xff]
          %v1855 = vld [vmem:[#allocation3 + $0x8] sm:$0xff]
          %v1856 = vld [vmem:[#allocation3 + $0x10] sm:$0xff]
          %v1857 = vld [vmem:[#allocation3 + $0x18] sm:$0xff]
          %v1858 = vld [vmem:[#allocation3 + $0x20] sm:$0xff]
          %v1859 = vld [vmem:[#allocation3 + $0x28] sm:$0xff]
          %v1860 = vld [vmem:[#allocation3 + $0x30] sm:$0xff]
          %v1861 = vld [vmem:[#allocation3 + $0x38] sm:$0xff]
          %v1862 = vld [vmem:[#allocation3 + $0x40] sm:$0xff]
          %v1863 = vld [vmem:[#allocation3 + $0x48] sm:$0xff]
          %v1864 = vld [vmem:[#allocation3 + $0x50] sm:$0xff]
          %v1865 = vld [vmem:[#allocation3 + $0x58] sm:$0xff]
          %v1866 = vld [vmem:[#allocation3 + $0x60] sm:$0xff]
          %v1867 = vld [vmem:[#allocation3 + $0x68] sm:$0xff]
          %v1868 = vld [vmem:[#allocation3 + $0x70] sm:$0xff]
          %v1869 = vld [vmem:[#allocation3 + $0x78] sm:$0xff]
          %v1870 = vld [vmem:[#allocation3 + $0x80] sm:$0xff]
          %v1871 = vld [vmem:[#allocation3 + $0x88] sm:$0xff]
          %v1872 = vld [vmem:[#allocation3 + $0x90] sm:$0xff]
          %v1873 = vld [vmem:[#allocation3 + $0x98] sm:$0xff]
          %v1874 = vld [vmem:[#allocation3 + $0xa0] sm:$0xff]
          %v1875 = vld [vmem:[#allocation3 + $0xa8] sm:$0xff]
          %v1876 = vld [vmem:[#allocation3 + $0xb0] sm:$0xff]
          %v1877 = vld [vmem:[#allocation3 + $0xb8] sm:$0xff]
          %v1878 = vld [vmem:[#allocation3 + $0xc0] sm:$0xff]
          %v1879 = vld [vmem:[#allocation3 + $0xc8] sm:$0xff]
          %v1880 = vld [vmem:[#allocation3 + $0xd0] sm:$0xff]
          %v1881 = vld [vmem:[#allocation3 + $0xd8] sm:$0xff]
          %v1882 = vld [vmem:[#allocation3 + $0xe0] sm:$0xff]
          %v1883 = vld [vmem:[#allocation3 + $0xe8] sm:$0xff]
          %v1884 = vld [vmem:[#allocation3 + $0xf0] sm:$0xff]
          %v1885 = vld [vmem:[#allocation3 + $0xf8] sm:$0xff]
          %1886 = vset.pattern.permute.xlu0 0
          %1887 = vperm.xlu0 %1886, %v1854
          %v1888 = vpop.permute.xlu0 %1887
          %1889 = vset.pattern.permute.xlu0 0
          %1890 = vperm.xlu0 %1889, %v1855
          %v1891 = vpop.permute.xlu0 %1890
          %1892 = vset.pattern.permute.xlu0 0
          %1893 = vperm.xlu0 %1892, %v1856
          %v1894 = vpop.permute.xlu0 %1893
          %1895 = vset.pattern.permute.xlu0 0
          %1896 = vperm.xlu0 %1895, %v1857
          %v1897 = vpop.permute.xlu0 %1896
          %1898 = vset.pattern.permute.xlu0 0
          %1899 = vperm.xlu0 %1898, %v1858
          %v1900 = vpop.permute.xlu0 %1899
          %1901 = vset.pattern.permute.xlu0 0
          %1902 = vperm.xlu0 %1901, %v1859
          %v1903 = vpop.permute.xlu0 %1902
          %1904 = vset.pattern.permute.xlu0 0
          %1905 = vperm.xlu0 %1904, %v1860
          %v1906 = vpop.permute.xlu0 %1905
          %1907 = vset.pattern.permute.xlu0 0
          %1908 = vperm.xlu0 %1907, %v1861
          %v1909 = vpop.permute.xlu0 %1908
          %1910 = vset.pattern.permute.xlu0 0
          %1911 = vperm.xlu0 %1910, %v1862
          %v1912 = vpop.permute.xlu0 %1911
          %1913 = vset.pattern.permute.xlu0 0
          %1914 = vperm.xlu0 %1913, %v1863
          %v1915 = vpop.permute.xlu0 %1914
          %1916 = vset.pattern.permute.xlu0 0
          %1917 = vperm.xlu0 %1916, %v1864
          %v1918 = vpop.permute.xlu0 %1917
          %1919 = vset.pattern.permute.xlu0 0
          %1920 = vperm.xlu0 %1919, %v1865
          %v1921 = vpop.permute.xlu0 %1920
          %1922 = vset.pattern.permute.xlu0 0
          %1923 = vperm.xlu0 %1922, %v1866
          %v1924 = vpop.permute.xlu0 %1923
          %1925 = vset.pattern.permute.xlu0 0
          %1926 = vperm.xlu0 %1925, %v1867
          %v1927 = vpop.permute.xlu0 %1926
          %1928 = vset.pattern.permute.xlu0 0
          %1929 = vperm.xlu0 %1928, %v1868
          %v1930 = vpop.permute.xlu0 %1929
          %1931 = vset.pattern.permute.xlu0 0
          %1932 = vperm.xlu0 %1931, %v1869
          %v1933 = vpop.permute.xlu0 %1932
          %1934 = vset.pattern.permute.xlu0 0
          %1935 = vperm.xlu0 %1934, %v1870
          %v1936 = vpop.permute.xlu0 %1935
          %1937 = vset.pattern.permute.xlu0 0
          %1938 = vperm.xlu0 %1937, %v1871
          %v1939 = vpop.permute.xlu0 %1938
          %1940 = vset.pattern.permute.xlu0 0
          %1941 = vperm.xlu0 %1940, %v1872
          %v1942 = vpop.permute.xlu0 %1941
          %1943 = vset.pattern.permute.xlu0 0
          %1944 = vperm.xlu0 %1943, %v1873
          %v1945 = vpop.permute.xlu0 %1944
          %1946 = vset.pattern.permute.xlu0 0
          %1947 = vperm.xlu0 %1946, %v1874
          %v1948 = vpop.permute.xlu0 %1947
          %1949 = vset.pattern.permute.xlu0 0
          %1950 = vperm.xlu0 %1949, %v1875
          %v1951 = vpop.permute.xlu0 %1950
          %1952 = vset.pattern.permute.xlu0 0
          %1953 = vperm.xlu0 %1952, %v1876
          %v1954 = vpop.permute.xlu0 %1953
          %1955 = vset.pattern.permute.xlu0 0
          %1956 = vperm.xlu0 %1955, %v1877
          %v1957 = vpop.permute.xlu0 %1956
          %1958 = vset.pattern.permute.xlu0 0
          %1959 = vperm.xlu0 %1958, %v1878
          %v1960 = vpop.permute.xlu0 %1959
          %1961 = vset.pattern.permute.xlu0 0
          %1962 = vperm.xlu0 %1961, %v1879
          %v1963 = vpop.permute.xlu0 %1962
          %1964 = vset.pattern.permute.xlu0 0
          %1965 = vperm.xlu0 %1964, %v1880
          %v1966 = vpop.permute.xlu0 %1965
          %1967 = vset.pattern.permute.xlu0 0
          %1968 = vperm.xlu0 %1967, %v1881
          %v1969 = vpop.permute.xlu0 %1968
          %1970 = vset.pattern.permute.xlu0 0
          %1971 = vperm.xlu0 %1970, %v1882
          %v1972 = vpop.permute.xlu0 %1971
          %1973 = vset.pattern.permute.xlu0 0
          %1974 = vperm.xlu0 %1973, %v1883
          %v1975 = vpop.permute.xlu0 %1974
          %1976 = vset.pattern.permute.xlu0 0
          %1977 = vperm.xlu0 %1976, %v1884
          %v1978 = vpop.permute.xlu0 %1977
          %1979 = vset.pattern.permute.xlu0 0
          %1980 = vperm.xlu0 %1979, %v1885
          %v1981 = vpop.permute.xlu0 %1980
          %1982 = vst [vmem:[%s230] sm:$0xff] %v1888
          %1983 = vst [vmem:[%s230 + $0x8] sm:$0xff] %v1891
          %1984 = vst [vmem:[%s230 + $0x10] sm:$0xff] %v1894
          %1985 = vst [vmem:[%s230 + $0x18] sm:$0xff] %v1897
          %1986 = vst [vmem:[%s230 + $0x20] sm:$0xff] %v1900
          %1987 = vst [vmem:[%s230 + $0x28] sm:$0xff] %v1903
          %1988 = vst [vmem:[%s230 + $0x30] sm:$0xff] %v1906
          %1989 = vst [vmem:[%s230 + $0x38] sm:$0xff] %v1909
          %1990 = vst [vmem:[%s230 + $0x40] sm:$0xff] %v1912
          %1991 = vst [vmem:[%s230 + $0x48] sm:$0xff] %v1915
          %1992 = vst [vmem:[%s230 + $0x50] sm:$0xff] %v1918
          %1993 = vst [vmem:[%s230 + $0x58] sm:$0xff] %v1921
          %1994 = vst [vmem:[%s230 + $0x60] sm:$0xff] %v1924
          %1995 = vst [vmem:[%s230 + $0x68] sm:$0xff] %v1927
          %1996 = vst [vmem:[%s230 + $0x70] sm:$0xff] %v1930
          %1997 = vst [vmem:[%s230 + $0x78] sm:$0xff] %v1933
          %1998 = vst [vmem:[%s230 + $0x80] sm:$0xff] %v1936
          %1999 = vst [vmem:[%s230 + $0x88] sm:$0xff] %v1939
          %2000 = vst [vmem:[%s230 + $0x90] sm:$0xff] %v1942
          %2001 = vst [vmem:[%s230 + $0x98] sm:$0xff] %v1945
          %2002 = vst [vmem:[%s230 + $0xa0] sm:$0xff] %v1948
          %2003 = vst [vmem:[%s230 + $0xa8] sm:$0xff] %v1951
          %2004 = vst [vmem:[%s230 + $0xb0] sm:$0xff] %v1954
          %2005 = vst [vmem:[%s230 + $0xb8] sm:$0xff] %v1957
          %2006 = vst [vmem:[%s230 + $0xc0] sm:$0xff] %v1960
          %2007 = vst [vmem:[%s230 + $0xc8] sm:$0xff] %v1963
          %2008 = vst [vmem:[%s230 + $0xd0] sm:$0xff] %v1966
          %2009 = vst [vmem:[%s230 + $0xd8] sm:$0xff] %v1969
          %2010 = vst [vmem:[%s230 + $0xe0] sm:$0xff] %v1972
          %2011 = vst [vmem:[%s230 + $0xe8] sm:$0xff] %v1975
          %2012 = vst [vmem:[%s230 + $0xf0] sm:$0xff] %v1978
          %2013 = vst [vmem:[%s230 + $0xf8] sm:$0xff] %v1981
        $region44: #{tpu_custom_call.1} parent=27 // pred_fallthru
          _
        %s2014 = sand.u32 %s107, 1
        %s2015 = scalar_lea.sflag [#allocation6], %s2014
        %s2016 = sand.u32 %s107, 1
        %s2017 = smul.addr %s2016, 256
        %s2018 = scalar_lea.vmem [#allocation9], %s2017
        // Predicated region
        $region45: #{tpu_custom_call.1} parent=27 // pred_check
          %p2019 = pneg %p117
        $region46: #{tpu_custom_call.1} parent=27 // pred_check_branch
          %2021 = sbr.rel (%p2019) target = $region48
        $region47: #{tpu_custom_call.1} parent=27 // pred_region
          %s2022 = smul.u32 32, %s28
          %s2024 = ssub.s32 4096, 4096
          %2025 = vsyncadd %s2015, %s2024
          %s2026 = smul.addr %s27, 32
          %s2027 = sadd.s32 %s2022, %s2026
          %s2028 = smul.addr %s2027, 128
          %s2029 = scalar_lea.hbm %s2, %s2028
          %s2030 = sshll.u32 %s2018, 4
          %s2031 = int_to_ptr.vmem [resolvable:$true] %s2030
          %2036 = dma.vmem_to_hbm [thread:$0]  %s2031, 4096, %s2029, %s2015, 128, 128, 8
        $region48: #{tpu_custom_call.1} parent=27 // pred_fallthru
          _
      $region28: #{tpu_custom_call.1} parent=5 // pred_fallthru
        _
      %p2037 = scmp.le.s32.totalorder 2, %s17
      // Predicated region
      $region49: #{tpu_custom_call.1} parent=5 // pred_check
        %p2038 = pneg %p2037
      $region50: #{tpu_custom_call.1} parent=5 // pred_check_branch
        %2040 = sbr.rel (%p2038) target = $region52
      $region51: #{tpu_custom_call.1} parent=5 // pred_region
        %s2041 = ssub.s32 %s17, 2
        // Predicated region
        $region53: #{tpu_custom_call.1} parent=51 // pred_check
          %p2042 = pneg %p123
        $region54: #{tpu_custom_call.1} parent=51 // pred_check_branch
          %2044 = sbr.rel (%p2042) target = $region56
        $region55: #{tpu_custom_call.1} parent=51 // pred_region
          %s2045 = sand.u32 %s108, 1
          %s2046 = scalar_lea.sflag [#allocation6], %s2045
          %s2047 = sand.u32 %s108, 1
          %s2048 = smul.addr %s2047, 256
          %s2049 = scalar_lea.vmem [#allocation9], %s2048
          %2050 = dma.done %s2046, 4096
        $region56: #{tpu_custom_call.1} parent=51 // pred_fallthru
          _
      $region52: #{tpu_custom_call.1} parent=5 // pred_fallthru
        _
    $region6: #{tpu_custom_call.1} parent=1 // loop_footer
      %s21 = sadd.s32 1, %s17
    $region7: #{tpu_custom_call.1} parent=1 // loop_footer_branch
      %16 = sbr.rel target = $region3
    $region8: #{tpu_custom_call.1} parent=1 // loop_exit
      _
    %2051 = vsyncpa [#allocation5], 1
    %s2052 = scalar_lea.sflag [#allocation5], 1
    %2053 = vsyncpa %s2052, 1
    %2054 = vsyncpa [#allocation8], 1
    %s2055 = scalar_lea.sflag [#allocation8], 1
    %2056 = vsyncpa %s2055, 1
    %2057 = vsyncpa [#allocation6], 1
    %s2058 = scalar_lea.sflag [#allocation6], 1
    %2059 = vsyncpa %s2058, 1

</llo_original>
